<compile_context>
chip_gen: v5e
topology: v5e:2x2
jax: 0.10.0
libtpu: 0.0.40
codegen_flags: <defaults>
</compile_context>

<pallas_src>
import functools

import jax
import jax.numpy as jnp
from jax.experimental import pallas as pl
from jax.experimental.pallas import tpu as pltpu

D_MODEL = 32
NHEAD = 2
DIM_FF = 64
HEAD_DIM = D_MODEL // NHEAD
SCALE = 1.0 / float(HEAD_DIM) ** 0.5
LN_EPS = 1e-5

TARGET_ATTN_ROWS = 256     # batched M-dim (sets_per_block * set_size) per grid step
FFN_BLOCK_ROWS = 512       # voxel rows per FFN grid step


def _round_up(x, m):
    return -(-x // m) * m


# ----------------------------- Kernel A: batched per-set multi-head attention
def _attn_kernel(x_ref, bias_ref, wqkv_ref, bqkv_ref, wo_ref, bo_ref, o_ref,
                 *, mxu_dtype):
    C, HD = D_MODEL, HEAD_DIM
    nsets, S = bias_ref.shape                  # sets in this block, set size

    # Single fused [Q | K | V] projection: (M, 2C) x (2C, 3C) -> (M, 3C).
    x = x_ref[...].astype(mxu_dtype)           # rows are [query | value]
    qkv = jnp.dot(x, wqkv_ref[...].astype(mxu_dtype),
                  preferred_element_type=jnp.float32) + bqkv_ref[...]

    bias = bias_ref[...][:, None, :]           # (nsets, 1, S) additive key mask

    out = None
    for h in range(NHEAD):
        q_h = qkv[:, h * HD:(h + 1) * HD].reshape(nsets, S, HD)
        k_h = qkv[:, C + h * HD:C + (h + 1) * HD].reshape(nsets, S, HD)
        v_h = qkv[:, 2 * C + h * HD:2 * C + (h + 1) * HD].reshape(nsets, S, HD)

        s = jnp.einsum('bqd,bkd->bqk',
                       q_h.astype(mxu_dtype), k_h.astype(mxu_dtype),
                       preferred_element_type=jnp.float32) * SCALE + bias
        s = s - jnp.max(s, axis=-1, keepdims=True)
        prob = jnp.exp(s)
        # NOTE: assumes no fully-masked set (same precondition as the module).
        prob = prob * pl.reciprocal(jnp.sum(prob, axis=-1, keepdims=True),
                                    approx=True)

        ctx = jnp.einsum('bqk,bkd->bqd',
                         prob.astype(mxu_dtype), v_h.astype(mxu_dtype),
                         preferred_element_type=jnp.float32)        # (nsets,S,HD)

        # Output projection accumulated per head: ctx_h @ Wo^T[h*HD:(h+1)*HD, :]
        contrib = jnp.dot(ctx.reshape(nsets * S, HD).astype(mxu_dtype),
                          wo_ref[h * HD:(h + 1) * HD, :].astype(mxu_dtype),
                          preferred_element_type=jnp.float32)
        out = contrib if out is None else out + contrib

    o_ref[...] = out + bo_ref[...]


# ----------------------------- Kernel B: residual + LN + FFN + residual + LN
def _ffn_kernel(src_ref, attn_ref, g1_ref, be1_ref, g2_ref, be2_ref,
                w1_ref, b1_ref, w2_ref, b2_ref, o_ref, *, mxu_dtype):
    def layernorm(v, g, b):
        mu = jnp.mean(v, axis=-1, keepdims=True)
        vc = v - mu
        var = jnp.mean(vc * vc, axis=-1, keepdims=True)
        return vc * jax.lax.rsqrt(var + LN_EPS) * g + b

    x = src_ref[...] + attn_ref[...]
    h = layernorm(x, g1_ref[...], be1_ref[...])
    f = jnp.dot(h.astype(mxu_dtype), w1_ref[...].astype(mxu_dtype),
                preferred_element_type=jnp.float32) + b1_ref[...]
    f = jnp.maximum(f, 0.0)                                  # relu
    f = jnp.dot(f.astype(mxu_dtype), w2_ref[...].astype(mxu_dtype),
                preferred_element_type=jnp.float32) + b2_ref[...]
    o_ref[...] = layernorm(h + f, g2_ref[...], be2_ref[...])


# ----------------------------- Wrapper ---------------------------------------
@functools.partial(jax.jit, static_argnames=("mxu_dtype",))
def set_attention_pallas(src, pos, key_padding_mask, voxel_inds, p,
                         *, mxu_dtype=jnp.float32):
    N, C = src.shape
    set_num, S = voxel_inds.shape
    F = p['w1_t'].shape[1]

    # ---- gather + pack [query | value] slab (index plumbing, plain JAX) -----
    # TODO(synk): at production DSVT sizes, move this gather into the attention
    # kernel (PrefetchScalarGridSpec row-gather) to halve HBM traffic.
    feats = src[voxel_inds]                            # (set_num, S, C)
    query = feats + pos[voxel_inds]
    x = jnp.concatenate([query, feats], axis=-1)       # (set_num, S, 2C)
    x = x.reshape(set_num * S, 2 * C)
    bias = jnp.where(key_padding_mask, jnp.float32(-1e30),
                     jnp.float32(0.0))                 # (set_num, S) additive

    # ---- choose sets-per-block so M = spb*S is MXU sized ---------------------
    spb = _round_up(max(1, -(-TARGET_ATTN_ROWS // S)), 8)
    if spb >= set_num:
        spb = n_sets = set_num                         # single full block
    else:
        n_sets = _round_up(set_num, spb)
    if n_sets > set_num:                               # pad with unmasked dummy sets
        x = jnp.concatenate(
            [x, jnp.zeros(((n_sets - set_num) * S, 2 * C), x.dtype)], axis=0)
        bias = jnp.concatenate(
            [bias, jnp.zeros((n_sets - set_num, S), bias.dtype)], axis=0)
    x = x.astype(mxu_dtype)                            # bf16 path: halves DMA

    attn = pl.pallas_call(
        functools.partial(_attn_kernel, mxu_dtype=mxu_dtype),
        out_shape=jax.ShapeDtypeStruct((n_sets * S, C), jnp.float32),
        grid=(n_sets // spb,),
        in_specs=[
            pl.BlockSpec((spb * S, 2 * C), lambda i: (i, 0)),    # [q | v] rows
            pl.BlockSpec((spb, S), lambda i: (i, 0)),            # additive mask
            pl.BlockSpec((2 * C, 3 * C), lambda i: (0, 0)),      # fused Wqkv^T
            pl.BlockSpec((1, 3 * C), lambda i: (0, 0)),          # fused bias
            pl.BlockSpec((C, C), lambda i: (0, 0)),              # Wo^T
            pl.BlockSpec((1, C), lambda i: (0, 0)),              # bo
        ],
        out_specs=pl.BlockSpec((spb * S, C), lambda i: (i, 0)),
        compiler_params=pltpu.CompilerParams(
            dimension_semantics=("parallel",)),
    )(x, bias, p['w_qkv_t'], p['b_qkv'], p['wo_t'], p['bo'])

    # ---- unique / first-occurrence scatter-back (index plumbing) ------------
    # Assumes every voxel index in [0, N) appears in voxel_inds (as in DSVT).
    flat = voxel_inds.reshape(-1)
    L = flat.shape[0]
    perm = jnp.full((N,), L, dtype=jnp.int32).at[flat].min(
        jnp.arange(L, dtype=jnp.int32))
    src2 = attn[perm]                                   # (N, C)

    # ---- residual + LN + FFN + residual + LN, tiled over voxel rows ---------
    if N > FFN_BLOCK_ROWS:
        tn = FFN_BLOCK_ROWS
        n_rows = _round_up(N, tn)
    else:
        tn = n_rows = N
    if n_rows > N:
        pad = jnp.zeros((n_rows - N, C), jnp.float32)
        src_p = jnp.concatenate([src, pad], axis=0)
        src2_p = jnp.concatenate([src2, pad], axis=0)
    else:
        src_p, src2_p = src, src2

    row_spec = pl.BlockSpec((tn, C), lambda i: (i, 0))
    vec_c = pl.BlockSpec((1, C), lambda i: (0, 0))
    out = pl.pallas_call(
        functools.partial(_ffn_kernel, mxu_dtype=mxu_dtype),
        out_shape=jax.ShapeDtypeStruct((n_rows, C), jnp.float32),
        grid=(n_rows // tn,),
        in_specs=[
            row_spec, row_spec,                                  # src, scattered attn
            vec_c, vec_c, vec_c, vec_c,                          # g1, be1, g2, be2
            pl.BlockSpec((C, F), lambda i: (0, 0)),              # W1^T
            pl.BlockSpec((1, F), lambda i: (0, 0)),              # b1
            pl.BlockSpec((F, C), lambda i: (0, 0)),              # W2^T
            vec_c,                                               # b2
        ],
        out_specs=row_spec,
        compiler_params=pltpu.CompilerParams(
            dimension_semantics=("parallel",)),
    )(src_p, src2_p, p['g1'], p['be1'], p['g2'], p['be2'],
      p['w1_t'], p['b1'], p['w2_t'], p['b2'])
    return out[:N]


# ----------------------------- Parameters ------------------------------------
def init_params(key):
    C, F = D_MODEL, DIM_FF
    ks = jax.random.split(key, 12)

    def nrm(k, shape, scale=0.1):
        return (scale * jax.random.normal(k, shape)).astype(jnp.float32)

    in_proj_w = nrm(ks[0], (3 * C, C))     # nn.MultiheadAttention.in_proj_weight
    in_proj_b = nrm(ks[1], (3 * C,))
    out_proj_w = nrm(ks[2], (C, C))
    out_proj_b = nrm(ks[3], (C,))
    w1 = nrm(ks[4], (F, C)); b1 = nrm(ks[5], (F,))      # linear1
    w2 = nrm(ks[6], (C, F)); b2 = nrm(ks[7], (C,))      # linear2
    g1 = jnp.ones((C,), jnp.float32) + nrm(ks[8], (C,))
    be1 = nrm(ks[9], (C,))
    g2 = jnp.ones((C,), jnp.float32) + nrm(ks[10], (C,))
    be2 = nrm(ks[11], (C,))

    wq_t = in_proj_w[:C].T
    wk_t = in_proj_w[C:2 * C].T
    wv_t = in_proj_w[2 * C:].T
    bq = in_proj_b[:C].reshape(1, C)
    bk = in_proj_b[C:2 * C].reshape(1, C)
    bv = in_proj_b[2 * C:].reshape(1, C)

    # Fused projection for the kernel.  Kernel input rows are [query | value],
    # so the weight is block-structured: query drives Q,K; value drives V.
    w_qkv_t = jnp.zeros((2 * C, 3 * C), jnp.float32)
    w_qkv_t = (w_qkv_t.at[:C, :C].set(wq_t)
                        .at[:C, C:2 * C].set(wk_t)
                        .at[C:, 2 * C:].set(wv_t))
    b_qkv = jnp.concatenate([bq, bk, bv], axis=-1)      # (1, 3C)

    return dict(
        wq_t=wq_t, wk_t=wk_t, wv_t=wv_t, bq=bq, bk=bk, bv=bv,
        w_qkv_t=w_qkv_t, b_qkv=b_qkv,
        wo_t=out_proj_w.T, bo=out_proj_b.reshape(1, C),
        w1_t=w1.T, b1=b1.reshape(1, F),
        w2_t=w2.T, b2=b2.reshape(1, C),
        g1=g1.reshape(1, C), be1=be1.reshape(1, C),
        g2=g2.reshape(1, C), be2=be2.reshape(1, C),
    )


# ----------------------------- Pure-JAX reference (for verification) ---------
def reference(src, pos, key_padding_mask, voxel_inds, p):
    N, C = src.shape
    set_features = src[voxel_inds]
    q = set_features + pos[voxel_inds]
    v = set_features
    Q = q @ p['wq_t'] + p['bq']
    K = q @ p['wk_t'] + p['bk']
    V = v @ p['wv_t'] + p['bv']
    B, S, _ = Q.shape
    Qh = Q.reshape(B, S, NHEAD, HEAD_DIM).transpose(0, 2, 1, 3)
    Kh = K.reshape(B, S, NHEAD, HEAD_DIM).transpose(0, 2, 1, 3)
    Vh = V.reshape(B, S, NHEAD, HEAD_DIM).transpose(0, 2, 1, 3)
    scores = jnp.einsum('bhqd,bhkd->bhqk', Qh, Kh) * SCALE
    scores = scores + jnp.where(key_padding_mask, -1e30, 0.0)[:, None, None, :]
    attn = jax.nn.softmax(scores, axis=-1)
    out = jnp.einsum('bhqk,bhkd->bhqd', attn, Vh).transpose(0, 2, 1, 3).reshape(B, S, C)
    out = out @ p['wo_t'] + p['bo']

    flat = voxel_inds.reshape(-1)
    L = flat.shape[0]
    perm = jnp.full((N,), L, dtype=jnp.int32).at[flat].min(
        jnp.arange(L, dtype=jnp.int32))
    src2 = out.reshape(-1, C)[perm]

    def ln(x, g, b):
        mu = jnp.mean(x, axis=-1, keepdims=True)
        var = jnp.mean((x - mu) ** 2, axis=-1, keepdims=True)
        return (x - mu) / jnp.sqrt(var + LN_EPS) * g + b

    h = ln(src + src2, p['g1'], p['be1'])
    f = jnp.maximum(h @ p['w1_t'] + p['b1'], 0.0) @ p['w2_t'] + p['b2']
    return ln(h + f, p['g2'], p['be2'])


# ----------------------------- Main -------------------------------------------
if __name__ == "__main__":
    key = jax.random.PRNGKey(0)
    N, C = 16, D_MODEL
    set_num, S = 4, 8
    ks = jax.random.split(key, 4)

    src = jax.random.normal(ks[0], (N, C), jnp.float32)
    pos = jax.random.normal(ks[1], (N, C), jnp.float32)

    # voxel_inds covers every voxel index (required for the residual, as in DSVT)
    first = jnp.arange(N, dtype=jnp.int32)
    second = jax.random.permutation(ks[2], N).astype(jnp.int32)
    voxel_inds = jnp.concatenate([first, second]).reshape(set_num, S)

    # mask a couple of keys in set 0 (never a fully-masked set)
    key_padding_mask = jnp.zeros((set_num, S), dtype=bool).at[0, S - 2:].set(True)

    params = init_params(ks[3])
    ref = reference(src, pos, key_padding_mask, voxel_inds, params)

    # f32 path (v5e-friendly).  Tolerance covers the EUP approximate reciprocal
    # used for the softmax denominator.
    out_f32 = jax.block_until_ready(
        set_attention_pallas(src, pos, key_padding_mask, voxel_inds, params))
    assert out_f32.shape == (N, C)
    assert jnp.allclose(out_f32, ref, atol=1e-2, rtol=1e-2), "f32 mismatch vs reference"

    # bf16-MXU path (v6e/v7x): matmul operands bf16, softmax/LayerNorm in f32.
    out_bf16 = jax.block_until_ready(
        set_attention_pallas(src, pos, key_padding_mask, voxel_inds, params,
                             mxu_dtype=jnp.bfloat16))
    assert out_bf16.shape == (N, C)
    assert bool(jnp.all(jnp.isfinite(out_bf16)))
    assert float(jnp.max(jnp.abs(out_bf16 - ref))) < 0.15, "bf16 path diverged"

    print("KERNEL_OK")
</pallas_src>

<mosaic_0001>
module attributes {stable_mosaic.version = 11 : i64} {
  func.func @_attn_kernel(%arg0: i32, %arg1: memref<32x64xf32, #tpu.memory_space<vmem>>, %arg2: memref<4x8xf32, #tpu.memory_space<vmem>>, %arg3: memref<64x96xf32, #tpu.memory_space<vmem>>, %arg4: memref<1x96xf32, #tpu.memory_space<vmem>>, %arg5: memref<32x32xf32, #tpu.memory_space<vmem>>, %arg6: memref<1x32xf32, #tpu.memory_space<vmem>>, %arg7: memref<32x32xf32, #tpu.memory_space<vmem>>) attributes {dimension_semantics = [#tpu.dimension_semantics<parallel>], iteration_bounds = array<i64: 1>, scalar_prefetch = 0 : i64, scratch_operands = 0 : i64, tpu.core_type = #tpu.core_type<tc>, window_params = [{transform_indices = @transform_0, window_bounds = array<i64: 32, 64>}, {transform_indices = @transform_1, window_bounds = array<i64: 4, 8>}, {pipeline_mode = #tpu.pipeline_mode<synchronous>, transform_indices = @transform_2, window_bounds = array<i64: 64, 96>}, {pipeline_mode = #tpu.pipeline_mode<synchronous>, transform_indices = @transform_3, window_bounds = array<i64: 1, 96>}, {pipeline_mode = #tpu.pipeline_mode<synchronous>, transform_indices = @transform_4, window_bounds = array<i64: 32, 32>}, {pipeline_mode = #tpu.pipeline_mode<synchronous>, transform_indices = @transform_5, window_bounds = array<i64: 1, 32>}, {transform_indices = @transform_6, window_bounds = array<i64: 32, 32>}]} {
    %c0 = arith.constant 0 : index
    %c0_0 = arith.constant 0 : index
    %0 = vector.load %arg1[%c0, %c0_0] : memref<32x64xf32, #tpu.memory_space<vmem>>, vector<32x64xf32>
    %c0_1 = arith.constant 0 : index
    %c0_2 = arith.constant 0 : index
    %1 = vector.load %arg3[%c0_1, %c0_2] : memref<64x96xf32, #tpu.memory_space<vmem>>, vector<64x96xf32>
    %cst = arith.constant dense<0.000000e+00> : vector<32x96xf32>
    %2 = tpu.matmul %0, %1, %cst {dimension_numbers = #tpu.dot_dimension_numbers<[1], [0], [0], [1], [0, 0, 1, 1], [], []>} : vector<32x64xf32>, vector<64x96xf32>, vector<32x96xf32> -> vector<32x96xf32>
    %c0_3 = arith.constant 0 : index
    %c0_4 = arith.constant 0 : index
    %3 = vector.load %arg4[%c0_3, %c0_4] : memref<1x96xf32, #tpu.memory_space<vmem>>, vector<1x96xf32>
    %4 = vector.broadcast %3 : vector<1x96xf32> to vector<32x96xf32>
    %5 = arith.addf %2, %4 : vector<32x96xf32>
    %c0_5 = arith.constant 0 : index
    %c0_6 = arith.constant 0 : index
    %6 = vector.load %arg2[%c0_5, %c0_6] : memref<4x8xf32, #tpu.memory_space<vmem>>, vector<4x8xf32>
    %7 = vector.shape_cast %6 : vector<4x8xf32> to vector<4x1x8xf32>
    %8 = vector.extract_strided_slice %5 {offsets = [0, 0], sizes = [32, 16], strides = [1, 1]} : vector<32x96xf32> to vector<32x16xf32>
    %9 = vector.shape_cast %8 : vector<32x16xf32> to vector<4x8x16xf32>
    %10 = vector.extract_strided_slice %5 {offsets = [0, 32], sizes = [32, 16], strides = [1, 1]} : vector<32x96xf32> to vector<32x16xf32>
    %11 = vector.shape_cast %10 : vector<32x16xf32> to vector<4x8x16xf32>
    %12 = vector.extract_strided_slice %5 {offsets = [0, 64], sizes = [32, 16], strides = [1, 1]} : vector<32x96xf32> to vector<32x16xf32>
    %13 = vector.shape_cast %12 : vector<32x16xf32> to vector<4x8x16xf32>
    "tpu.trace_start"() <{level = 10 : i32, message = "bqd,bkd->bqk"}> : () -> ()
    %cst_7 = arith.constant dense<0.000000e+00> : vector<4x8x8xf32>
    %14 = tpu.matmul %9, %11, %cst_7 {dimension_numbers = #tpu.dot_dimension_numbers<[2], [2], [1], [1], [0, 0, 0, 1, 1, 1], [0], [0]>} : vector<4x8x16xf32>, vector<4x8x16xf32>, vector<4x8x8xf32> -> vector<4x8x8xf32>
    "tpu.trace_stop"() : () -> ()
    %cst_8 = arith.constant 2.500000e-01 : f32
    %15 = vector.broadcast %cst_8 : f32 to vector<4x8x8xf32>
    %16 = arith.mulf %14, %15 : vector<4x8x8xf32>
    %17 = vector.broadcast %7 : vector<4x1x8xf32> to vector<4x8x8xf32>
    %18 = arith.addf %16, %17 : vector<4x8x8xf32>
    %cst_9 = arith.constant dense<0xFF800000> : vector<4x8xf32>
    %19 = vector.multi_reduction <maximumf>, %18, %cst_9 [2] : vector<4x8x8xf32> to vector<4x8xf32>
    %20 = vector.shape_cast %19 : vector<4x8xf32> to vector<4x8x1xf32>
    %21 = vector.broadcast %20 : vector<4x8x1xf32> to vector<4x8x8xf32>
    %22 = arith.subf %18, %21 : vector<4x8x8xf32>
    %23 = math.exp %22 : vector<4x8x8xf32>
    %cst_10 = arith.constant dense<0.000000e+00> : vector<4x8xf32>
    %24 = vector.multi_reduction <add>, %23, %cst_10 [2] : vector<4x8x8xf32> to vector<4x8xf32>
    %25 = vector.shape_cast %24 : vector<4x8xf32> to vector<4x8x1xf32>
    %26 = tpu.reciprocal %25 {approx = true} : vector<4x8x1xf32> -> vector<4x8x1xf32>
    %27 = vector.broadcast %26 : vector<4x8x1xf32> to vector<4x8x8xf32>
    %28 = arith.mulf %23, %27 : vector<4x8x8xf32>
    "tpu.trace_start"() <{level = 10 : i32, message = "bqk,bkd->bqd"}> : () -> ()
    %cst_11 = arith.constant dense<0.000000e+00> : vector<4x8x16xf32>
    %29 = tpu.matmul %28, %13, %cst_11 {dimension_numbers = #tpu.dot_dimension_numbers<[2], [1], [1], [2], [0, 0, 0, 1, 1, 2], [0], [0]>} : vector<4x8x8xf32>, vector<4x8x16xf32>, vector<4x8x16xf32> -> vector<4x8x16xf32>
    "tpu.trace_stop"() : () -> ()
    %30 = vector.shape_cast %29 : vector<4x8x16xf32> to vector<32x16xf32>
    %c0_12 = arith.constant 0 : index
    %c0_13 = arith.constant 0 : index
    %31 = vector.load %arg5[%c0_12, %c0_13] : memref<32x32xf32, #tpu.memory_space<vmem>>, vector<16x32xf32>
    %cst_14 = arith.constant dense<0.000000e+00> : vector<32x32xf32>
    %32 = tpu.matmul %30, %31, %cst_14 {dimension_numbers = #tpu.dot_dimension_numbers<[1], [0], [0], [1], [0, 0, 1, 1], [], []>} : vector<32x16xf32>, vector<16x32xf32>, vector<32x32xf32> -> vector<32x32xf32>
    %33 = vector.extract_strided_slice %5 {offsets = [0, 16], sizes = [32, 16], strides = [1, 1]} : vector<32x96xf32> to vector<32x16xf32>
    %34 = vector.shape_cast %33 : vector<32x16xf32> to vector<4x8x16xf32>
    %35 = vector.extract_strided_slice %5 {offsets = [0, 48], sizes = [32, 16], strides = [1, 1]} : vector<32x96xf32> to vector<32x16xf32>
    %36 = vector.shape_cast %35 : vector<32x16xf32> to vector<4x8x16xf32>
    %37 = vector.extract_strided_slice %5 {offsets = [0, 80], sizes = [32, 16], strides = [1, 1]} : vector<32x96xf32> to vector<32x16xf32>
    %38 = vector.shape_cast %37 : vector<32x16xf32> to vector<4x8x16xf32>
    "tpu.trace_start"() <{level = 10 : i32, message = "bqd,bkd->bqk"}> : () -> ()
    %cst_15 = arith.constant dense<0.000000e+00> : vector<4x8x8xf32>
    %39 = tpu.matmul %34, %36, %cst_15 {dimension_numbers = #tpu.dot_dimension_numbers<[2], [2], [1], [1], [0, 0, 0, 1, 1, 1], [0], [0]>} : vector<4x8x16xf32>, vector<4x8x16xf32>, vector<4x8x8xf32> -> vector<4x8x8xf32>
    "tpu.trace_stop"() : () -> ()
    %cst_16 = arith.constant 2.500000e-01 : f32
    %40 = vector.broadcast %cst_16 : f32 to vector<4x8x8xf32>
    %41 = arith.mulf %39, %40 : vector<4x8x8xf32>
    %42 = vector.broadcast %7 : vector<4x1x8xf32> to vector<4x8x8xf32>
    %43 = arith.addf %41, %42 : vector<4x8x8xf32>
    %cst_17 = arith.constant dense<0xFF800000> : vector<4x8xf32>
    %44 = vector.multi_reduction <maximumf>, %43, %cst_17 [2] : vector<4x8x8xf32> to vector<4x8xf32>
    %45 = vector.shape_cast %44 : vector<4x8xf32> to vector<4x8x1xf32>
    %46 = vector.broadcast %45 : vector<4x8x1xf32> to vector<4x8x8xf32>
    %47 = arith.subf %43, %46 : vector<4x8x8xf32>
    %48 = math.exp %47 : vector<4x8x8xf32>
    %cst_18 = arith.constant dense<0.000000e+00> : vector<4x8xf32>
    %49 = vector.multi_reduction <add>, %48, %cst_18 [2] : vector<4x8x8xf32> to vector<4x8xf32>
    %50 = vector.shape_cast %49 : vector<4x8xf32> to vector<4x8x1xf32>
    %51 = tpu.reciprocal %50 {approx = true} : vector<4x8x1xf32> -> vector<4x8x1xf32>
    %52 = vector.broadcast %51 : vector<4x8x1xf32> to vector<4x8x8xf32>
    %53 = arith.mulf %48, %52 : vector<4x8x8xf32>
    "tpu.trace_start"() <{level = 10 : i32, message = "bqk,bkd->bqd"}> : () -> ()
    %cst_19 = arith.constant dense<0.000000e+00> : vector<4x8x16xf32>
    %54 = tpu.matmul %53, %38, %cst_19 {dimension_numbers = #tpu.dot_dimension_numbers<[2], [1], [1], [2], [0, 0, 0, 1, 1, 2], [0], [0]>} : vector<4x8x8xf32>, vector<4x8x16xf32>, vector<4x8x16xf32> -> vector<4x8x16xf32>
    "tpu.trace_stop"() : () -> ()
    %55 = vector.shape_cast %54 : vector<4x8x16xf32> to vector<32x16xf32>
    %c16 = arith.constant 16 : index
    %c0_20 = arith.constant 0 : index
    %56 = vector.load %arg5[%c16, %c0_20] : memref<32x32xf32, #tpu.memory_space<vmem>>, vector<16x32xf32>
    %cst_21 = arith.constant dense<0.000000e+00> : vector<32x32xf32>
    %57 = tpu.matmul %55, %56, %cst_21 {dimension_numbers = #tpu.dot_dimension_numbers<[1], [0], [0], [1], [0, 0, 1, 1], [], []>} : vector<32x16xf32>, vector<16x32xf32>, vector<32x32xf32> -> vector<32x32xf32>
    %58 = arith.addf %32, %57 : vector<32x32xf32>
    %c0_22 = arith.constant 0 : index
    %c0_23 = arith.constant 0 : index
    %59 = vector.load %arg6[%c0_22, %c0_23] : memref<1x32xf32, #tpu.memory_space<vmem>>, vector<1x32xf32>
    %60 = vector.broadcast %59 : vector<1x32xf32> to vector<32x32xf32>
    %61 = arith.addf %58, %60 : vector<32x32xf32>
    %c0_24 = arith.constant 0 : index
    %c0_25 = arith.constant 0 : index
    %62 = vector.load %arg7[%c0_24, %c0_25] : memref<32x32xf32, #tpu.memory_space<vmem>>, vector<32x32xf32>
    tpu.vector_store %arg7[%c0_24, %c0_25], %61 {strides = array<i32>} : memref<32x32xf32, #tpu.memory_space<vmem>>, vector<32x32xf32>,
    return
  }
  func.func @transform_0(%arg0: i32) -> (i32, i32) {
    %c0_i32 = arith.constant 0 : i32
    %c0_i32_0 = arith.constant 0 : i32
    return %arg0, %c0_i32 : i32, i32
  }
  func.func @transform_1(%arg0: i32) -> (i32, i32) {
    %c0_i32 = arith.constant 0 : i32
    %c0_i32_0 = arith.constant 0 : i32
    return %arg0, %c0_i32 : i32, i32
  }
  func.func @transform_2(%arg0: i32) -> (i32, i32) {
    %c0_i32 = arith.constant 0 : i32
    %c0_i32_0 = arith.constant 0 : i32
    %c0_i32_1 = arith.constant 0 : i32
    return %c0_i32, %c0_i32_0 : i32, i32
  }
  func.func @transform_3(%arg0: i32) -> (i32, i32) {
    %c0_i32 = arith.constant 0 : i32
    %c0_i32_0 = arith.constant 0 : i32
    %c0_i32_1 = arith.constant 0 : i32
    return %c0_i32, %c0_i32_0 : i32, i32
  }
  func.func @transform_4(%arg0: i32) -> (i32, i32) {
    %c0_i32 = arith.constant 0 : i32
    %c0_i32_0 = arith.constant 0 : i32
    %c0_i32_1 = arith.constant 0 : i32
    return %c0_i32, %c0_i32_0 : i32, i32
  }
  func.func @transform_5(%arg0: i32) -> (i32, i32) {
    %c0_i32 = arith.constant 0 : i32
    %c0_i32_0 = arith.constant 0 : i32
    %c0_i32_1 = arith.constant 0 : i32
    return %c0_i32, %c0_i32_0 : i32, i32
  }
  func.func @transform_6(%arg0: i32) -> (i32, i32) {
    %c0_i32 = arith.constant 0 : i32
    %c0_i32_0 = arith.constant 0 : i32
    return %arg0, %c0_i32 : i32, i32
  }
}

module attributes {stable_mosaic.version = 11 : i64} {
  func.func @_ffn_kernel(%arg0: i32, %arg1: memref<16x32xf32, #tpu.memory_space<vmem>>, %arg2: memref<16x32xf32, #tpu.memory_space<vmem>>, %arg3: memref<1x32xf32, #tpu.memory_space<vmem>>, %arg4: memref<1x32xf32, #tpu.memory_space<vmem>>, %arg5: memref<1x32xf32, #tpu.memory_space<vmem>>, %arg6: memref<1x32xf32, #tpu.memory_space<vmem>>, %arg7: memref<32x64xf32, #tpu.memory_space<vmem>>, %arg8: memref<1x64xf32, #tpu.memory_space<vmem>>, %arg9: memref<64x32xf32, #tpu.memory_space<vmem>>, %arg10: memref<1x32xf32, #tpu.memory_space<vmem>>, %arg11: memref<16x32xf32, #tpu.memory_space<vmem>>) attributes {dimension_semantics = [#tpu.dimension_semantics<parallel>], iteration_bounds = array<i64: 1>, scalar_prefetch = 0 : i64, scratch_operands = 0 : i64, tpu.core_type = #tpu.core_type<tc>, window_params = [{transform_indices = @transform_0, window_bounds = array<i64: 16, 32>}, {transform_indices = @transform_1, window_bounds = array<i64: 16, 32>}, {pipeline_mode = #tpu.pipeline_mode<synchronous>, transform_indices = @transform_2, window_bounds = array<i64: 1, 32>}, {pipeline_mode = #tpu.pipeline_mode<synchronous>, transform_indices = @transform_3, window_bounds = array<i64: 1, 32>}, {pipeline_mode = #tpu.pipeline_mode<synchronous>, transform_indices = @transform_4, window_bounds = array<i64: 1, 32>}, {pipeline_mode = #tpu.pipeline_mode<synchronous>, transform_indices = @transform_5, window_bounds = array<i64: 1, 32>}, {pipeline_mode = #tpu.pipeline_mode<synchronous>, transform_indices = @transform_6, window_bounds = array<i64: 32, 64>}, {pipeline_mode = #tpu.pipeline_mode<synchronous>, transform_indices = @transform_7, window_bounds = array<i64: 1, 64>}, {pipeline_mode = #tpu.pipeline_mode<synchronous>, transform_indices = @transform_8, window_bounds = array<i64: 64, 32>}, {pipeline_mode = #tpu.pipeline_mode<synchronous>, transform_indices = @transform_9, window_bounds = array<i64: 1, 32>}, {transform_indices = @transform_10, window_bounds = array<i64: 16, 32>}]} {
    %c0 = arith.constant 0 : index
    %c0_0 = arith.constant 0 : index
    %0 = vector.load %arg1[%c0, %c0_0] : memref<16x32xf32, #tpu.memory_space<vmem>>, vector<16x32xf32>
    %c0_1 = arith.constant 0 : index
    %c0_2 = arith.constant 0 : index
    %1 = vector.load %arg2[%c0_1, %c0_2] : memref<16x32xf32, #tpu.memory_space<vmem>>, vector<16x32xf32>
    %2 = arith.addf %0, %1 : vector<16x32xf32>
    %c0_3 = arith.constant 0 : index
    %c0_4 = arith.constant 0 : index
    %3 = vector.load %arg3[%c0_3, %c0_4] : memref<1x32xf32, #tpu.memory_space<vmem>>, vector<1x32xf32>
    %c0_5 = arith.constant 0 : index
    %c0_6 = arith.constant 0 : index
    %4 = vector.load %arg4[%c0_5, %c0_6] : memref<1x32xf32, #tpu.memory_space<vmem>>, vector<1x32xf32>
    %cst = arith.constant dense<0.000000e+00> : vector<16xf32>
    %5 = vector.multi_reduction <add>, %2, %cst [1] : vector<16x32xf32> to vector<16xf32>
    %6 = vector.shape_cast %5 : vector<16xf32> to vector<16x1xf32>
    %cst_7 = arith.constant 3.200000e+01 : f32
    %7 = vector.broadcast %cst_7 : f32 to vector<16x1xf32>
    %8 = arith.divf %6, %7 : vector<16x1xf32>
    %9 = vector.broadcast %8 : vector<16x1xf32> to vector<16x32xf32>
    %10 = arith.subf %2, %9 : vector<16x32xf32>
    %11 = arith.mulf %10, %10 : vector<16x32xf32>
    %cst_8 = arith.constant dense<0.000000e+00> : vector<16xf32>
    %12 = vector.multi_reduction <add>, %11, %cst_8 [1] : vector<16x32xf32> to vector<16xf32>
    %13 = vector.shape_cast %12 : vector<16xf32> to vector<16x1xf32>
    %cst_9 = arith.constant 3.200000e+01 : f32
    %14 = vector.broadcast %cst_9 : f32 to vector<16x1xf32>
    %15 = arith.divf %13, %14 : vector<16x1xf32>
    %cst_10 = arith.constant 9.99999974E-6 : f32
    %16 = vector.broadcast %cst_10 : f32 to vector<16x1xf32>
    %17 = arith.addf %15, %16 : vector<16x1xf32>
    %18 = math.rsqrt %17 : vector<16x1xf32>
    %19 = vector.broadcast %18 : vector<16x1xf32> to vector<16x32xf32>
    %20 = arith.mulf %10, %19 : vector<16x32xf32>
    %21 = vector.broadcast %3 : vector<1x32xf32> to vector<16x32xf32>
    %22 = arith.mulf %20, %21 : vector<16x32xf32>
    %23 = vector.broadcast %4 : vector<1x32xf32> to vector<16x32xf32>
    %24 = arith.addf %22, %23 : vector<16x32xf32>
    %c0_11 = arith.constant 0 : index
    %c0_12 = arith.constant 0 : index
    %25 = vector.load %arg7[%c0_11, %c0_12] : memref<32x64xf32, #tpu.memory_space<vmem>>, vector<32x64xf32>
    %cst_13 = arith.constant dense<0.000000e+00> : vector<16x64xf32>
    %26 = tpu.matmul %24, %25, %cst_13 {dimension_numbers = #tpu.dot_dimension_numbers<[1], [0], [0], [1], [0, 0, 1, 1], [], []>} : vector<16x32xf32>, vector<32x64xf32>, vector<16x64xf32> -> vector<16x64xf32>
    %c0_14 = arith.constant 0 : index
    %c0_15 = arith.constant 0 : index
    %27 = vector.load %arg8[%c0_14, %c0_15] : memref<1x64xf32, #tpu.memory_space<vmem>>, vector<1x64xf32>
    %28 = vector.broadcast %27 : vector<1x64xf32> to vector<16x64xf32>
    %29 = arith.addf %26, %28 : vector<16x64xf32>
    %cst_16 = arith.constant 0.000000e+00 : f32
    %30 = vector.broadcast %cst_16 : f32 to vector<16x64xf32>
    %31 = arith.maximumf %29, %30 : vector<16x64xf32>
    %c0_17 = arith.constant 0 : index
    %c0_18 = arith.constant 0 : index
    %32 = vector.load %arg9[%c0_17, %c0_18] : memref<64x32xf32, #tpu.memory_space<vmem>>, vector<64x32xf32>
    %cst_19 = arith.constant dense<0.000000e+00> : vector<16x32xf32>
    %33 = tpu.matmul %31, %32, %cst_19 {dimension_numbers = #tpu.dot_dimension_numbers<[1], [0], [0], [1], [0, 0, 1, 1], [], []>} : vector<16x64xf32>, vector<64x32xf32>, vector<16x32xf32> -> vector<16x32xf32>
    %c0_20 = arith.constant 0 : index
    %c0_21 = arith.constant 0 : index
    %34 = vector.load %arg10[%c0_20, %c0_21] : memref<1x32xf32, #tpu.memory_space<vmem>>, vector<1x32xf32>
    %35 = vector.broadcast %34 : vector<1x32xf32> to vector<16x32xf32>
    %36 = arith.addf %33, %35 : vector<16x32xf32>
    %37 = arith.addf %24, %36 : vector<16x32xf32>
    %c0_22 = arith.constant 0 : index
    %c0_23 = arith.constant 0 : index
    %38 = vector.load %arg5[%c0_22, %c0_23] : memref<1x32xf32, #tpu.memory_space<vmem>>, vector<1x32xf32>
    %c0_24 = arith.constant 0 : index
    %c0_25 = arith.constant 0 : index
    %39 = vector.load %arg6[%c0_24, %c0_25] : memref<1x32xf32, #tpu.memory_space<vmem>>, vector<1x32xf32>
    %cst_26 = arith.constant dense<0.000000e+00> : vector<16xf32>
    %40 = vector.multi_reduction <add>, %37, %cst_26 [1] : vector<16x32xf32> to vector<16xf32>
    %41 = vector.shape_cast %40 : vector<16xf32> to vector<16x1xf32>
    %cst_27 = arith.constant 3.200000e+01 : f32
    %42 = vector.broadcast %cst_27 : f32 to vector<16x1xf32>
    %43 = arith.divf %41, %42 : vector<16x1xf32>
    %44 = vector.broadcast %43 : vector<16x1xf32> to vector<16x32xf32>
    %45 = arith.subf %37, %44 : vector<16x32xf32>
    %46 = arith.mulf %45, %45 : vector<16x32xf32>
    %cst_28 = arith.constant dense<0.000000e+00> : vector<16xf32>
    %47 = vector.multi_reduction <add>, %46, %cst_28 [1] : vector<16x32xf32> to vector<16xf32>
    %48 = vector.shape_cast %47 : vector<16xf32> to vector<16x1xf32>
    %cst_29 = arith.constant 3.200000e+01 : f32
    %49 = vector.broadcast %cst_29 : f32 to vector<16x1xf32>
    %50 = arith.divf %48, %49 : vector<16x1xf32>
    %cst_30 = arith.constant 9.99999974E-6 : f32
    %51 = vector.broadcast %cst_30 : f32 to vector<16x1xf32>
    %52 = arith.addf %50, %51 : vector<16x1xf32>
    %53 = math.rsqrt %52 : vector<16x1xf32>
    %54 = vector.broadcast %53 : vector<16x1xf32> to vector<16x32xf32>
    %55 = arith.mulf %45, %54 : vector<16x32xf32>
    %56 = vector.broadcast %38 : vector<1x32xf32> to vector<16x32xf32>
    %57 = arith.mulf %55, %56 : vector<16x32xf32>
    %58 = vector.broadcast %39 : vector<1x32xf32> to vector<16x32xf32>
    %59 = arith.addf %57, %58 : vector<16x32xf32>
    %c0_31 = arith.constant 0 : index
    %c0_32 = arith.constant 0 : index
    %60 = vector.load %arg11[%c0_31, %c0_32] : memref<16x32xf32, #tpu.memory_space<vmem>>, vector<16x32xf32>
    tpu.vector_store %arg11[%c0_31, %c0_32], %59 {strides = array<i32>} : memref<16x32xf32, #tpu.memory_space<vmem>>, vector<16x32xf32>,
    return
  }
  func.func @transform_0(%arg0: i32) -> (i32, i32) {
    %c0_i32 = arith.constant 0 : i32
    %c0_i32_0 = arith.constant 0 : i32
    return %arg0, %c0_i32 : i32, i32
  }
  func.func @transform_1(%arg0: i32) -> (i32, i32) {
    %c0_i32 = arith.constant 0 : i32
    %c0_i32_0 = arith.constant 0 : i32
    return %arg0, %c0_i32 : i32, i32
  }
  func.func @transform_2(%arg0: i32) -> (i32, i32) {
    %c0_i32 = arith.constant 0 : i32
    %c0_i32_0 = arith.constant 0 : i32
    %c0_i32_1 = arith.constant 0 : i32
    return %c0_i32, %c0_i32_0 : i32, i32
  }
  func.func @transform_3(%arg0: i32) -> (i32, i32) {
    %c0_i32 = arith.constant 0 : i32
    %c0_i32_0 = arith.constant 0 : i32
    %c0_i32_1 = arith.constant 0 : i32
    return %c0_i32, %c0_i32_0 : i32, i32
  }
  func.func @transform_4(%arg0: i32) -> (i32, i32) {
    %c0_i32 = arith.constant 0 : i32
    %c0_i32_0 = arith.constant 0 : i32
    %c0_i32_1 = arith.constant 0 : i32
    return %c0_i32, %c0_i32_0 : i32, i32
  }
  func.func @transform_5(%arg0: i32) -> (i32, i32) {
    %c0_i32 = arith.constant 0 : i32
    %c0_i32_0 = arith.constant 0 : i32
    %c0_i32_1 = arith.constant 0 : i32
    return %c0_i32, %c0_i32_0 : i32, i32
  }
  func.func @transform_6(%arg0: i32) -> (i32, i32) {
    %c0_i32 = arith.constant 0 : i32
    %c0_i32_0 = arith.constant 0 : i32
    %c0_i32_1 = arith.constant 0 : i32
    return %c0_i32, %c0_i32_0 : i32, i32
  }
  func.func @transform_7(%arg0: i32) -> (i32, i32) {
    %c0_i32 = arith.constant 0 : i32
    %c0_i32_0 = arith.constant 0 : i32
    %c0_i32_1 = arith.constant 0 : i32
    return %c0_i32, %c0_i32_0 : i32, i32
  }
  func.func @transform_8(%arg0: i32) -> (i32, i32) {
    %c0_i32 = arith.constant 0 : i32
    %c0_i32_0 = arith.constant 0 : i32
    %c0_i32_1 = arith.constant 0 : i32
    return %c0_i32, %c0_i32_0 : i32, i32
  }
  func.func @transform_9(%arg0: i32) -> (i32, i32) {
    %c0_i32 = arith.constant 0 : i32
    %c0_i32_0 = arith.constant 0 : i32
    %c0_i32_1 = arith.constant 0 : i32
    return %c0_i32, %c0_i32_0 : i32, i32
  }
  func.func @transform_10(%arg0: i32) -> (i32, i32) {
    %c0_i32 = arith.constant 0 : i32
    %c0_i32_0 = arith.constant 0 : i32
    return %arg0, %c0_i32 : i32, i32
  }
}

</mosaic_0001>

<llo_original>
// kernel: set_attention_pallas.3
$region0: #{set_attention_pallas.3}
  #allocation0 [shape = 'u32[]', space=smem, size = 0x4, offset = 0x4, fixed_abs, tag = 'smem constant byte address 0x4 - core index']
  #allocation1 [shape = 'u32[72,128]{1,0:T(1,128)}', space=vmem, size = 0x9000, scoped, tag = 'internal scratch']
  %s0 = inlined_call_operand.vmem [shape: f32[16,32], index: 0, kind: input, shape index: {}]
  %s1 = inlined_call_operand.vmem [shape: f32[16,32], index: 1, kind: input, shape index: {}]
  %s2 = inlined_call_operand.vmem [shape: f32[1,32], index: 2, kind: input, shape index: {}]
  %s3 = inlined_call_operand.vmem [shape: f32[1,32], index: 3, kind: input, shape index: {}]
  %s4 = inlined_call_operand.vmem [shape: f32[1,32], index: 4, kind: input, shape index: {}]
  %s5 = inlined_call_operand.vmem [shape: f32[1,32], index: 5, kind: input, shape index: {}]
  %s6 = inlined_call_operand.vmem [shape: f32[32,64], index: 6, kind: input, shape index: {}]
  %s7 = inlined_call_operand.vmem [shape: f32[1,64], index: 7, kind: input, shape index: {}]
  %s8 = inlined_call_operand.vmem [shape: f32[64,32], index: 8, kind: input, shape index: {}]
  %s9 = inlined_call_operand.vmem [shape: f32[1,32], index: 9, kind: input, shape index: {}]
  %s10 = inlined_call_operand.hbm [shape: f32[16,32], index: 10, kind: output, shape index: {}]
  %s11 = sld [smem:[#allocation0]]
  $region50: #{set_attention_pallas.3} parent=0
    _
  %s13 = ssub.s32 1, %s11
  %s14 = scalar_select 0, %s13, %s11
  $region1: #{set_attention_pallas.3} parent=0
    #allocation2 [shape = 'u8[8192]{0}', space=vmem, size = 0x2000, scoped, tag = 'output window, operand 0, single buffered']
    #allocation3 [shape = 's32[1]{0}', space=sflag, size = 0x4, scoped, tag = 'scoped memory for set_attention_pallas.3']
    %15 = vsyncpa [#allocation3], 0
    // Predicated region
    $region2: #{set_attention_pallas.3} parent=1 // pred_check
      _
    $region3: #{set_attention_pallas.3} parent=1 // pred_check_branch
      %17 = sbr.rel (0) target = $region5
    $region4: #{set_attention_pallas.3} parent=1 // pred_region
      _
    $region5: #{set_attention_pallas.3} parent=1 // pred_fallthru
      _
    // Predicated region
    $region6: #{set_attention_pallas.3} parent=1 // pred_check
      _
    $region7: #{set_attention_pallas.3} parent=1 // pred_check_branch
      %19 = sbr.rel (0) target = $region9
    $region8: #{set_attention_pallas.3} parent=1 // pred_region
      _
    $region9: #{set_attention_pallas.3} parent=1 // pred_fallthru
      _
    // Predicated region
    $region10: #{set_attention_pallas.3} parent=1 // pred_check
      _
    $region11: #{set_attention_pallas.3} parent=1 // pred_check_branch
      %21 = sbr.rel (0) target = $region13
    $region12: #{set_attention_pallas.3} parent=1 // pred_region
      _
    $region13: #{set_attention_pallas.3} parent=1 // pred_fallthru
      _
    // Predicated region
    $region14: #{set_attention_pallas.3} parent=1 // pred_check
      _
    $region15: #{set_attention_pallas.3} parent=1 // pred_check_branch
      %23 = sbr.rel (0) target = $region17
    $region16: #{set_attention_pallas.3} parent=1 // pred_region
      _
    $region17: #{set_attention_pallas.3} parent=1 // pred_fallthru
      _
    // Predicated region
    $region18: #{set_attention_pallas.3} parent=1 // pred_check
      _
    $region19: #{set_attention_pallas.3} parent=1 // pred_check_branch
      %25 = sbr.rel (0) target = $region21
    $region20: #{set_attention_pallas.3} parent=1 // pred_region
      _
    $region21: #{set_attention_pallas.3} parent=1 // pred_fallthru
      _
    // Predicated region
    $region22: #{set_attention_pallas.3} parent=1 // pred_check
      _
    $region23: #{set_attention_pallas.3} parent=1 // pred_check_branch
      %27 = sbr.rel (0) target = $region25
    $region24: #{set_attention_pallas.3} parent=1 // pred_region
      _
    $region25: #{set_attention_pallas.3} parent=1 // pred_fallthru
      _
    // Predicated region
    $region26: #{set_attention_pallas.3} parent=1 // pred_check
      _
    $region27: #{set_attention_pallas.3} parent=1 // pred_check_branch
      %29 = sbr.rel (0) target = $region29
    $region28: #{set_attention_pallas.3} parent=1 // pred_region
      _
    $region29: #{set_attention_pallas.3} parent=1 // pred_fallthru
      _
    // Predicated region
    $region30: #{set_attention_pallas.3} parent=1 // pred_check
      _
    $region31: #{set_attention_pallas.3} parent=1 // pred_check_branch
      %31 = sbr.rel (0) target = $region33
    $region32: #{set_attention_pallas.3} parent=1 // pred_region
      _
    $region33: #{set_attention_pallas.3} parent=1 // pred_fallthru
      _
    // Predicated region
    $region34: #{set_attention_pallas.3} parent=1 // pred_check
      _
    $region35: #{set_attention_pallas.3} parent=1 // pred_check_branch
      %33 = sbr.rel (0) target = $region37
    $region36: #{set_attention_pallas.3} parent=1 // pred_region
      _
    $region37: #{set_attention_pallas.3} parent=1 // pred_fallthru
      _
    // Predicated region
    $region38: #{set_attention_pallas.3} parent=1 // pred_check
      _
    $region39: #{set_attention_pallas.3} parent=1 // pred_check_branch
      %35 = sbr.rel (0) target = $region41
    $region40: #{set_attention_pallas.3} parent=1 // pred_region
      _
    $region41: #{set_attention_pallas.3} parent=1 // pred_fallthru
      _
    %v36 = vld [vmem:[%s0] sm:$0xff]
    %v37 = vld [vmem:[%s0 + $0x8] sm:$0xff]
    %v38 = vld [vmem:[%s1] sm:$0xff]
    %v39 = vld [vmem:[%s1 + $0x8] sm:$0xff]
    %v40 = vadd.f32 %v36, %v38
    %v41 = vadd.f32 %v37, %v39
    %v42 = vld [vmem:[%s2] sm:$0x1]
    %v43 = vld [vmem:[%s3] sm:$0x1]
    %vm44 = vcmask 261120
    %v45 = vsel %vm44, %v40, 0.0
    %46 = vadd.xlane.f32.xlu0 %v45
    %v47 = vpop.xlane.xlu0 %46
    %v48 = vsel %vm44, %v41, 0.0
    %49 = vadd.xlane.f32.xlu0 %v48
    %v50 = vpop.xlane.xlu0 %49
    %v51 = vrcp.pop 32.0
    %v52 = vmul.f32 32.0, %v51
    %v53 = vsub.f32 1.0, %v52
    %v54 = vmul.f32 %v51, %v53
    %v55 = vadd.f32 %v51, %v54
    %vm56 = vweird.f32 %v51
    %v57 = vsel %vm56, %v51, %v55
    %v58 = vmul.f32 %v47, %v57
    %v59 = vmul.f32 %v50, %v57
    %v60 = vsub.f32 %v40, %v58
    %v61 = vsub.f32 %v41, %v59
    %v62 = vmul.f32 %v60, %v60
    %v63 = vmul.f32 %v61, %v61
    %v64 = vsel %vm44, %v62, 0.0
    %65 = vadd.xlane.f32.xlu0 %v64
    %v66 = vpop.xlane.xlu0 %65
    %v67 = vsel %vm44, %v63, 0.0
    %68 = vadd.xlane.f32.xlu0 %v67
    %v69 = vpop.xlane.xlu0 %68
    %v70 = vmul.f32 %v66, %v57
    %v71 = vmul.f32 %v69, %v57
    %v72 = vadd.f32 %v70, 1e-05
    %v73 = vadd.f32 %v71, 1e-05
    %v74 = vrsqrt.pop %v72
    %v75 = vmul.f32 %v74, %v72
    %v76 = vmul.f32 %v75, %v74
    %v77 = vmul.f32 0.5, %v76
    %v78 = vsub.f32 1.5, %v77
    %v79 = vmul.f32 %v74, %v78
    %vm80 = vweird.f32 %v72
    %vm81 = vweird.f32 %v74
    %vm82 = vmor %vm80, %vm81
    %v83 = vsel %vm82, %v74, %v79
    %v84 = vrsqrt.pop %v73
    %v85 = vmul.f32 %v84, %v73
    %v86 = vmul.f32 %v85, %v84
    %v87 = vmul.f32 0.5, %v86
    %v88 = vsub.f32 1.5, %v87
    %v89 = vmul.f32 %v84, %v88
    %vm90 = vweird.f32 %v73
    %vm91 = vweird.f32 %v84
    %vm92 = vmor %vm90, %vm91
    %v93 = vsel %vm92, %v84, %v89
    %v94 = vmul.f32 %v60, %v83
    %v95 = vmul.f32 %v61, %v93
    %v97 = vperm.slane %v42, 0
    %v99 = vmul.f32 %v94, %v97
    %v100 = vmul.f32 %v95, %v97
    %v102 = vperm.slane %v43, 0
    %v104 = vadd.f32 %v99, %v102
    %v105 = vadd.f32 %v100, %v102
    %v106 = vld [vmem:[%s6] sm:$0xff]
    %v107 = vld [vmem:[%s6 + $0x8] sm:$0xff]
    %v108 = vld [vmem:[%s6 + $0x10] sm:$0xff]
    %v109 = vld [vmem:[%s6 + $0x18] sm:$0xff]
    %v110 = vld [vmem:[%s7] sm:$0x1]
    %v112 = vperm.slane %v110, 0
    %v115 = vsel %vm44, %v104, 0
    %v118 = vsel %vm44, %v105, 0
    %120 = vmatpush.msra.mxu0 0.0
    %121 = vmatpush.msra.mxu0 0.0
    %122 = vmatpush.msra.mxu0 0.0
    %123 = vmatpush.msra.mxu0 0.0
    %124 = vmatpush.msra.mxu0 0.0
    %125 = vmatpush.msra.mxu0 0.0
    %126 = vmatpush.msra.mxu0 0.0
    %127 = vmatpush.msra.mxu0 0.0
    %128 = vmatpush.msra.mxu0 0.0
    %129 = vmatpush.msra.mxu0 0.0
    %130 = vmatpush.msra.mxu0 0.0
    %131 = vmatpush.msra.mxu0 0.0
    %132 = vmatpush.msra.mxu0 %v109
    %133 = vmatpush.msra.mxu0 %v108
    %134 = vmatpush.msra.mxu0 %v107
    %135 = vmatpush.msra.mxu0 %v106
    %136 = vmatmul.f32.gmra.mxu0 %v115
    %v137 = vpop.f32.mrf.mxu0
    %v138 = vadd.f32 %v112, %v137
    %139 = vmatmul.f32.gmra.mxu0 %v118
    %v140 = vpop.f32.mrf.mxu0
    %v141 = vadd.f32 %v112, %v140
    %142 = vdwg.mxu0
    %v143 = vmax.f32 %v138, 0.0
    %v144 = vmax.f32 %v141, 0.0
    %v145 = vld [vmem:[%s8] sm:$0xff]
    %v146 = vld [vmem:[%s8 + $0x8] sm:$0xff]
    %v147 = vld [vmem:[%s8 + $0x10] sm:$0xff]
    %v148 = vld [vmem:[%s8 + $0x18] sm:$0xff]
    %v149 = vld [vmem:[%s8 + $0x20] sm:$0xff]
    %v150 = vld [vmem:[%s8 + $0x28] sm:$0xff]
    %v151 = vld [vmem:[%s8 + $0x30] sm:$0xff]
    %v152 = vld [vmem:[%s8 + $0x38] sm:$0xff]
    %v153 = vld [vmem:[%s9] sm:$0x1]
    %v155 = vperm.slane %v153, 0
    %vm157 = vcmask 523264
    %v159 = vsel %vm157, %v143, 0
    %v162 = vsel %vm157, %v144, 0
    %164 = vmatpush.msra.mxu0 0.0
    %165 = vmatpush.msra.mxu0 0.0
    %166 = vmatpush.msra.mxu0 0.0
    %167 = vmatpush.msra.mxu0 0.0
    %168 = vmatpush.msra.mxu0 0.0
    %169 = vmatpush.msra.mxu0 0.0
    %170 = vmatpush.msra.mxu0 0.0
    %171 = vmatpush.msra.mxu0 0.0
    %172 = vmatpush.msra.mxu0 %v152
    %173 = vmatpush.msra.mxu0 %v151
    %174 = vmatpush.msra.mxu0 %v150
    %175 = vmatpush.msra.mxu0 %v149
    %176 = vmatpush.msra.mxu0 %v148
    %177 = vmatpush.msra.mxu0 %v147
    %178 = vmatpush.msra.mxu0 %v146
    %179 = vmatpush.msra.mxu0 %v145
    %180 = vmatmul.f32.gmra.mxu0 %v159
    %v181 = vpop.f32.mrf.mxu0
    %v182 = vadd.f32 %v155, %v181
    %183 = vmatmul.f32.gmra.mxu0 %v162
    %v184 = vpop.f32.mrf.mxu0
    %v185 = vadd.f32 %v155, %v184
    %186 = vdwg.mxu0
    %v187 = vadd.f32 %v104, %v182
    %v188 = vadd.f32 %v105, %v185
    %v189 = vld [vmem:[%s4] sm:$0x1]
    %v190 = vld [vmem:[%s5] sm:$0x1]
    %v191 = vsel %vm44, %v187, 0.0
    %192 = vadd.xlane.f32.xlu0 %v191
    %v193 = vpop.xlane.xlu0 %192
    %v194 = vsel %vm44, %v188, 0.0
    %195 = vadd.xlane.f32.xlu0 %v194
    %v196 = vpop.xlane.xlu0 %195
    %v197 = vmul.f32 %v193, %v57
    %v198 = vmul.f32 %v196, %v57
    %v199 = vsub.f32 %v187, %v197
    %v200 = vsub.f32 %v188, %v198
    %v201 = vmul.f32 %v199, %v199
    %v202 = vmul.f32 %v200, %v200
    %v203 = vsel %vm44, %v201, 0.0
    %204 = vadd.xlane.f32.xlu0 %v203
    %v205 = vpop.xlane.xlu0 %204
    %v206 = vsel %vm44, %v202, 0.0
    %207 = vadd.xlane.f32.xlu0 %v206
    %v208 = vpop.xlane.xlu0 %207
    %v209 = vmul.f32 %v205, %v57
    %v210 = vmul.f32 %v208, %v57
    %v211 = vadd.f32 %v209, 1e-05
    %v212 = vadd.f32 %v210, 1e-05
    %v213 = vrsqrt.pop %v211
    %v214 = vmul.f32 %v213, %v211
    %v215 = vmul.f32 %v214, %v213
    %v216 = vmul.f32 0.5, %v215
    %v217 = vsub.f32 1.5, %v216
    %v218 = vmul.f32 %v213, %v217
    %vm219 = vweird.f32 %v211
    %vm220 = vweird.f32 %v213
    %vm221 = vmor %vm219, %vm220
    %v222 = vsel %vm221, %v213, %v218
    %v223 = vrsqrt.pop %v212
    %v224 = vmul.f32 %v223, %v212
    %v225 = vmul.f32 %v224, %v223
    %v226 = vmul.f32 0.5, %v225
    %v227 = vsub.f32 1.5, %v226
    %v228 = vmul.f32 %v223, %v227
    %vm229 = vweird.f32 %v212
    %vm230 = vweird.f32 %v223
    %vm231 = vmor %vm229, %vm230
    %v232 = vsel %vm231, %v223, %v228
    %v233 = vmul.f32 %v199, %v222
    %v234 = vmul.f32 %v200, %v232
    %v236 = vperm.slane %v189, 0
    %v238 = vmul.f32 %v233, %v236
    %v239 = vmul.f32 %v234, %v236
    %v241 = vperm.slane %v190, 0
    %v243 = vadd.f32 %v238, %v241
    %v244 = vadd.f32 %v239, %v241
    %245 = vst.msk [vmem:[#allocation2] sm:$0xff] %vm44, %v243
    %246 = vst.msk [vmem:[#allocation2 + $0x8] sm:$0xff] %vm44, %v244
    // Predicated region
    $region42: #{set_attention_pallas.3} parent=1 // pred_check
      _
    $region43: #{set_attention_pallas.3} parent=1 // pred_check_branch
      %248 = sbr.rel (0) target = $region45
    $region44: #{set_attention_pallas.3} parent=1 // pred_region
      %250 = vsyncadd [#allocation3], 0
      %s251 = sshll.u32 [#allocation2], 4
      %s252 = int_to_ptr.vmem [resolvable:$true] %s251
      %s253 = sshll.u32 %s10, 4
      %s254 = int_to_ptr.hbm [resolvable:$true] %s253
      %259 = dma.vmem_to_hbm [thread:$0]  %s252, 256, %s254, [#allocation3], 128, 128, 8
    $region45: #{set_attention_pallas.3} parent=1 // pred_fallthru
      _
    // Predicated region
    $region46: #{set_attention_pallas.3} parent=1 // pred_check
      _
    $region47: #{set_attention_pallas.3} parent=1 // pred_check_branch
      %261 = sbr.rel (0) target = $region49
    $region48: #{set_attention_pallas.3} parent=1 // pred_region
      %263 = dma.done [#allocation3], 256
    $region49: #{set_attention_pallas.3} parent=1 // pred_fallthru
      _
    %264 = vsyncpa [#allocation3], 1

// kernel: set_attention_pallas.2
$region0: #{set_attention_pallas.2}
  #allocation0 [shape = 'u32[]', space=smem, size = 0x4, offset = 0x4, fixed_abs, tag = 'smem constant byte address 0x4 - core index']
  #allocation1 [shape = 'u32[72,128]{1,0:T(1,128)}', space=vmem, size = 0x9000, scoped, tag = 'internal scratch']
  %s0 = inlined_call_operand.vmem [shape: f32[32,64], index: 0, kind: input, shape index: {}]
  %s1 = inlined_call_operand.vmem [shape: f32[4,8], index: 1, kind: input, shape index: {}]
  %s2 = inlined_call_operand.vmem [shape: f32[64,96], index: 2, kind: input, shape index: {}]
  %s3 = inlined_call_operand.vmem [shape: f32[1,96], index: 3, kind: input, shape index: {}]
  %s4 = inlined_call_operand.vmem [shape: f32[32,32], index: 4, kind: input, shape index: {}]
  %s5 = inlined_call_operand.vmem [shape: f32[1,32], index: 5, kind: input, shape index: {}]
  %s6 = inlined_call_operand.vmem [shape: f32[32,32], index: 6, kind: output, shape index: {}]
  %s7 = sld [smem:[#allocation0]]
  $region34: #{set_attention_pallas.2} parent=0
    _
  %s9 = ssub.s32 1, %s7
  %s10 = scalar_select 0, %s9, %s7
  // Predicated region
  $region2: #{set_attention_pallas.2} parent=0 // pred_check
    _
  $region3: #{set_attention_pallas.2} parent=0 // pred_check_branch
    %12 = sbr.rel (0) target = $region5
  $region4: #{set_attention_pallas.2} parent=0 // pred_region
    _
  $region5: #{set_attention_pallas.2} parent=0 // pred_fallthru
    _
  // Predicated region
  $region6: #{set_attention_pallas.2} parent=0 // pred_check
    _
  $region7: #{set_attention_pallas.2} parent=0 // pred_check_branch
    %14 = sbr.rel (0) target = $region9
  $region8: #{set_attention_pallas.2} parent=0 // pred_region
    _
  $region9: #{set_attention_pallas.2} parent=0 // pred_fallthru
    _
  // Predicated region
  $region10: #{set_attention_pallas.2} parent=0 // pred_check
    _
  $region11: #{set_attention_pallas.2} parent=0 // pred_check_branch
    %16 = sbr.rel (0) target = $region13
  $region12: #{set_attention_pallas.2} parent=0 // pred_region
    _
  $region13: #{set_attention_pallas.2} parent=0 // pred_fallthru
    _
  // Predicated region
  $region14: #{set_attention_pallas.2} parent=0 // pred_check
    _
  $region15: #{set_attention_pallas.2} parent=0 // pred_check_branch
    %18 = sbr.rel (0) target = $region17
  $region16: #{set_attention_pallas.2} parent=0 // pred_region
    _
  $region17: #{set_attention_pallas.2} parent=0 // pred_fallthru
    _
  // Predicated region
  $region18: #{set_attention_pallas.2} parent=0 // pred_check
    _
  $region19: #{set_attention_pallas.2} parent=0 // pred_check_branch
    %20 = sbr.rel (0) target = $region21
  $region20: #{set_attention_pallas.2} parent=0 // pred_region
    _
  $region21: #{set_attention_pallas.2} parent=0 // pred_fallthru
    _
  // Predicated region
  $region22: #{set_attention_pallas.2} parent=0 // pred_check
    _
  $region23: #{set_attention_pallas.2} parent=0 // pred_check_branch
    %22 = sbr.rel (0) target = $region25
  $region24: #{set_attention_pallas.2} parent=0 // pred_region
    _
  $region25: #{set_attention_pallas.2} parent=0 // pred_fallthru
    _
  %v23 = vld [vmem:[%s0] sm:$0xff]
  %v24 = vld [vmem:[%s0 + $0x8] sm:$0xff]
  %v25 = vld [vmem:[%s0 + $0x10] sm:$0xff]
  %v26 = vld [vmem:[%s0 + $0x18] sm:$0xff]
  %v27 = vld [vmem:[%s2] sm:$0xff]
  %v28 = vld [vmem:[%s2 + $0x8] sm:$0xff]
  %v29 = vld [vmem:[%s2 + $0x10] sm:$0xff]
  %v30 = vld [vmem:[%s2 + $0x18] sm:$0xff]
  %v31 = vld [vmem:[%s2 + $0x20] sm:$0xff]
  %v32 = vld [vmem:[%s2 + $0x28] sm:$0xff]
  %v33 = vld [vmem:[%s2 + $0x30] sm:$0xff]
  %v34 = vld [vmem:[%s2 + $0x38] sm:$0xff]
  %v35 = vld [vmem:[%s3] sm:$0x1]
  %v37 = vperm.slane %v35, 0
  %vm39 = vcmask 523264
  %v41 = vsel %vm39, %v23, 0
  %v44 = vsel %vm39, %v24, 0
  %v47 = vsel %vm39, %v25, 0
  %v50 = vsel %vm39, %v26, 0
  %52 = vmatpush.msra.mxu0 0.0
  %53 = vmatpush.msra.mxu0 0.0
  %54 = vmatpush.msra.mxu0 0.0
  %55 = vmatpush.msra.mxu0 0.0
  %56 = vmatpush.msra.mxu0 0.0
  %57 = vmatpush.msra.mxu0 0.0
  %58 = vmatpush.msra.mxu0 0.0
  %59 = vmatpush.msra.mxu0 0.0
  %60 = vmatpush.msra.mxu0 %v34
  %61 = vmatpush.msra.mxu0 %v33
  %62 = vmatpush.msra.mxu0 %v32
  %63 = vmatpush.msra.mxu0 %v31
  %64 = vmatpush.msra.mxu0 %v30
  %65 = vmatpush.msra.mxu0 %v29
  %66 = vmatpush.msra.mxu0 %v28
  %67 = vmatpush.msra.mxu0 %v27
  %68 = vmatmul.f32.gmra.mxu0 %v41
  %v69 = vpop.f32.mrf.mxu0
  %v70 = vadd.f32 %v37, %v69
  %71 = vmatmul.f32.gmra.mxu0 %v44
  %v72 = vpop.f32.mrf.mxu0
  %v73 = vadd.f32 %v37, %v72
  %74 = vmatmul.f32.gmra.mxu0 %v47
  %v75 = vpop.f32.mrf.mxu0
  %v76 = vadd.f32 %v37, %v75
  %77 = vmatmul.f32.gmra.mxu0 %v50
  %v78 = vpop.f32.mrf.mxu0
  %v79 = vadd.f32 %v37, %v78
  %80 = vdwg.mxu0
  %v81 = vld [vmem:[%s1] sm:$0xf]
  %v83 = vrot.slane %v81, 1
  %v84 = vrot.slane %v81, 2
  %v85 = vrot.slane %v81, 3
  %87 = vrot.lane.b32.xlu0 %v70, 96
  %v88 = vpop.permute.xlu0 %87
  %vm89 = vcmask 130048
  %v90 = vsel %vm89, %v70, 0
  %v92 = vsel %vm89, %v88, 0
  %94 = vmatpush.xpose.msra.mxu0 0.0
  %95 = vmatpush.xpose.msra.mxu0 0.0
  %96 = vmatpush.xpose.msra.mxu0 0.0
  %97 = vmatpush.xpose.msra.mxu0 0.0
  %98 = vmatpush.xpose.msra.mxu0 0.0
  %99 = vmatpush.xpose.msra.mxu0 0.0
  %100 = vmatpush.xpose.msra.mxu0 0.0
  %101 = vmatpush.xpose.msra.mxu0 0.0
  %102 = vmatpush.xpose.msra.mxu0 0.0
  %103 = vmatpush.xpose.msra.mxu0 0.0
  %104 = vmatpush.xpose.msra.mxu0 0.0
  %105 = vmatpush.xpose.msra.mxu0 0.0
  %106 = vmatpush.xpose.msra.mxu0 0.0
  %107 = vmatpush.xpose.msra.mxu0 0.0
  %108 = vmatpush.xpose.msra.mxu0 0.0
  %109 = vmatpush.xpose.msra.mxu0 %v92
  %110 = vmatmul.f32.gmra.mxu0 %v90
  %v111 = vpop.f32.mrf.mxu0
  %v112 = vadd.f32 0.0, %v111
  %113 = vdwg.mxu0
  %115 = vrot.lane.b32.xlu0 %v73, 96
  %v116 = vpop.permute.xlu0 %115
  %v117 = vsel %vm89, %v73, 0
  %v119 = vsel %vm89, %v116, 0
  %121 = vmatpush.xpose.msra.mxu0 0.0
  %122 = vmatpush.xpose.msra.mxu0 0.0
  %123 = vmatpush.xpose.msra.mxu0 0.0
  %124 = vmatpush.xpose.msra.mxu0 0.0
  %125 = vmatpush.xpose.msra.mxu0 0.0
  %126 = vmatpush.xpose.msra.mxu0 0.0
  %127 = vmatpush.xpose.msra.mxu0 0.0
  %128 = vmatpush.xpose.msra.mxu0 0.0
  %129 = vmatpush.xpose.msra.mxu0 0.0
  %130 = vmatpush.xpose.msra.mxu0 0.0
  %131 = vmatpush.xpose.msra.mxu0 0.0
  %132 = vmatpush.xpose.msra.mxu0 0.0
  %133 = vmatpush.xpose.msra.mxu0 0.0
  %134 = vmatpush.xpose.msra.mxu0 0.0
  %135 = vmatpush.xpose.msra.mxu0 0.0
  %136 = vmatpush.xpose.msra.mxu0 %v119
  %137 = vmatmul.f32.gmra.mxu0 %v117
  %v138 = vpop.f32.mrf.mxu0
  %v139 = vadd.f32 0.0, %v138
  %140 = vdwg.mxu0
  %142 = vrot.lane.b32.xlu0 %v76, 96
  %v143 = vpop.permute.xlu0 %142
  %v144 = vsel %vm89, %v76, 0
  %v146 = vsel %vm89, %v143, 0
  %148 = vmatpush.xpose.msra.mxu0 0.0
  %149 = vmatpush.xpose.msra.mxu0 0.0
  %150 = vmatpush.xpose.msra.mxu0 0.0
  %151 = vmatpush.xpose.msra.mxu0 0.0
  %152 = vmatpush.xpose.msra.mxu0 0.0
  %153 = vmatpush.xpose.msra.mxu0 0.0
  %154 = vmatpush.xpose.msra.mxu0 0.0
  %155 = vmatpush.xpose.msra.mxu0 0.0
  %156 = vmatpush.xpose.msra.mxu0 0.0
  %157 = vmatpush.xpose.msra.mxu0 0.0
  %158 = vmatpush.xpose.msra.mxu0 0.0
  %159 = vmatpush.xpose.msra.mxu0 0.0
  %160 = vmatpush.xpose.msra.mxu0 0.0
  %161 = vmatpush.xpose.msra.mxu0 0.0
  %162 = vmatpush.xpose.msra.mxu0 0.0
  %163 = vmatpush.xpose.msra.mxu0 %v146
  %164 = vmatmul.f32.gmra.mxu0 %v144
  %v165 = vpop.f32.mrf.mxu0
  %v166 = vadd.f32 0.0, %v165
  %167 = vdwg.mxu0
  %169 = vrot.lane.b32.xlu0 %v79, 96
  %v170 = vpop.permute.xlu0 %169
  %v171 = vsel %vm89, %v79, 0
  %v173 = vsel %vm89, %v170, 0
  %175 = vmatpush.xpose.msra.mxu0 0.0
  %176 = vmatpush.xpose.msra.mxu0 0.0
  %177 = vmatpush.xpose.msra.mxu0 0.0
  %178 = vmatpush.xpose.msra.mxu0 0.0
  %179 = vmatpush.xpose.msra.mxu0 0.0
  %180 = vmatpush.xpose.msra.mxu0 0.0
  %181 = vmatpush.xpose.msra.mxu0 0.0
  %182 = vmatpush.xpose.msra.mxu0 0.0
  %183 = vmatpush.xpose.msra.mxu0 0.0
  %184 = vmatpush.xpose.msra.mxu0 0.0
  %185 = vmatpush.xpose.msra.mxu0 0.0
  %186 = vmatpush.xpose.msra.mxu0 0.0
  %187 = vmatpush.xpose.msra.mxu0 0.0
  %188 = vmatpush.xpose.msra.mxu0 0.0
  %189 = vmatpush.xpose.msra.mxu0 0.0
  %190 = vmatpush.xpose.msra.mxu0 %v173
  %191 = vmatmul.f32.gmra.mxu0 %v171
  %v192 = vpop.f32.mrf.mxu0
  %v193 = vadd.f32 0.0, %v192
  %194 = vdwg.mxu0
  %v195 = vmul.f32 %v112, 0.25
  %v196 = vmul.f32 %v139, 0.25
  %v197 = vmul.f32 %v166, 0.25
  %v198 = vmul.f32 %v193, 0.25
  %v199 = vperm.slane %v81, 0
  %v200 = vperm.slane %v83, 0
  %v201 = vperm.slane %v84, 0
  %v202 = vperm.slane %v85, 0
  %v207 = vadd.f32 %v195, %v199
  %v208 = vadd.f32 %v196, %v200
  %v209 = vadd.f32 %v197, %v201
  %v210 = vadd.f32 %v198, %v202
  %vm211 = vcmask 64512
  %v212 = vsel %vm211, %v207, -inf
  %213 = vmax.xlane.f32.xlu0 %v212
  %v214 = vpop.xlane.xlu0 %213
  %v215 = vsel %vm211, %v208, -inf
  %216 = vmax.xlane.f32.xlu0 %v215
  %v217 = vpop.xlane.xlu0 %216
  %v218 = vsel %vm211, %v209, -inf
  %219 = vmax.xlane.f32.xlu0 %v218
  %v220 = vpop.xlane.xlu0 %219
  %v221 = vsel %vm211, %v210, -inf
  %222 = vmax.xlane.f32.xlu0 %v221
  %v223 = vpop.xlane.xlu0 %222
  %v224 = vsub.f32 %v207, %v214
  %v225 = vsub.f32 %v208, %v217
  %v226 = vsub.f32 %v209, %v220
  %v227 = vsub.f32 %v210, %v223
  %v228 = vmul.f32 %v224, 1.442695
  %v229 = vpow.pop %v228
  %v230 = vmul.f32 %v225, 1.442695
  %v231 = vpow.pop %v230
  %v232 = vmul.f32 %v226, 1.442695
  %v233 = vpow.pop %v232
  %v234 = vmul.f32 %v227, 1.442695
  %v235 = vpow.pop %v234
  %v236 = vsel %vm211, %v229, 0.0
  %237 = vadd.xlane.f32.xlu0 %v236
  %v238 = vpop.xlane.xlu0 %237
  %v239 = vsel %vm211, %v231, 0.0
  %240 = vadd.xlane.f32.xlu0 %v239
  %v241 = vpop.xlane.xlu0 %240
  %v242 = vsel %vm211, %v233, 0.0
  %243 = vadd.xlane.f32.xlu0 %v242
  %v244 = vpop.xlane.xlu0 %243
  %v245 = vsel %vm211, %v235, 0.0
  %246 = vadd.xlane.f32.xlu0 %v245
  %v247 = vpop.xlane.xlu0 %246
  %v248 = vrcp.pop %v238
  %v249 = vrcp.pop %v241
  %v250 = vrcp.pop %v244
  %v251 = vrcp.pop %v247
  %v252 = vmul.f32 %v229, %v248
  %v253 = vmul.f32 %v231, %v249
  %v254 = vmul.f32 %v233, %v250
  %v255 = vmul.f32 %v235, %v251
  %256 = vrot.lane.b32.xlu0 %v70, 64
  %v257 = vpop.permute.xlu0 %256
  %v260 = vsel %vm211, %v252, 0
  %262 = vmatpush.msra.mxu0 0.0
  %263 = vmatpush.msra.mxu0 0.0
  %264 = vmatpush.msra.mxu0 0.0
  %265 = vmatpush.msra.mxu0 0.0
  %266 = vmatpush.msra.mxu0 0.0
  %267 = vmatpush.msra.mxu0 0.0
  %268 = vmatpush.msra.mxu0 0.0
  %269 = vmatpush.msra.mxu0 0.0
  %270 = vmatpush.msra.mxu0 0.0
  %271 = vmatpush.msra.mxu0 0.0
  %272 = vmatpush.msra.mxu0 0.0
  %273 = vmatpush.msra.mxu0 0.0
  %274 = vmatpush.msra.mxu0 0.0
  %275 = vmatpush.msra.mxu0 0.0
  %276 = vmatpush.msra.mxu0 0.0
  %277 = vmatpush.msra.mxu0 %v257
  %278 = vmatmul.f32.gmra.mxu0 %v260
  %v279 = vpop.f32.mrf.mxu0
  %v280 = vadd.f32 0.0, %v279
  %281 = vdwg.mxu0
  %282 = vrot.lane.b32.xlu0 %v73, 64
  %v283 = vpop.permute.xlu0 %282
  %v286 = vsel %vm211, %v253, 0
  %288 = vmatpush.msra.mxu0 0.0
  %289 = vmatpush.msra.mxu0 0.0
  %290 = vmatpush.msra.mxu0 0.0
  %291 = vmatpush.msra.mxu0 0.0
  %292 = vmatpush.msra.mxu0 0.0
  %293 = vmatpush.msra.mxu0 0.0
  %294 = vmatpush.msra.mxu0 0.0
  %295 = vmatpush.msra.mxu0 0.0
  %296 = vmatpush.msra.mxu0 0.0
  %297 = vmatpush.msra.mxu0 0.0
  %298 = vmatpush.msra.mxu0 0.0
  %299 = vmatpush.msra.mxu0 0.0
  %300 = vmatpush.msra.mxu0 0.0
  %301 = vmatpush.msra.mxu0 0.0
  %302 = vmatpush.msra.mxu0 0.0
  %303 = vmatpush.msra.mxu0 %v283
  %304 = vmatmul.f32.gmra.mxu0 %v286
  %v305 = vpop.f32.mrf.mxu0
  %v306 = vadd.f32 0.0, %v305
  %307 = vdwg.mxu0
  %308 = vrot.lane.b32.xlu0 %v76, 64
  %v309 = vpop.permute.xlu0 %308
  %v312 = vsel %vm211, %v254, 0
  %314 = vmatpush.msra.mxu0 0.0
  %315 = vmatpush.msra.mxu0 0.0
  %316 = vmatpush.msra.mxu0 0.0
  %317 = vmatpush.msra.mxu0 0.0
  %318 = vmatpush.msra.mxu0 0.0
  %319 = vmatpush.msra.mxu0 0.0
  %320 = vmatpush.msra.mxu0 0.0
  %321 = vmatpush.msra.mxu0 0.0
  %322 = vmatpush.msra.mxu0 0.0
  %323 = vmatpush.msra.mxu0 0.0
  %324 = vmatpush.msra.mxu0 0.0
  %325 = vmatpush.msra.mxu0 0.0
  %326 = vmatpush.msra.mxu0 0.0
  %327 = vmatpush.msra.mxu0 0.0
  %328 = vmatpush.msra.mxu0 0.0
  %329 = vmatpush.msra.mxu0 %v309
  %330 = vmatmul.f32.gmra.mxu0 %v312
  %v331 = vpop.f32.mrf.mxu0
  %v332 = vadd.f32 0.0, %v331
  %333 = vdwg.mxu0
  %334 = vrot.lane.b32.xlu0 %v79, 64
  %v335 = vpop.permute.xlu0 %334
  %v338 = vsel %vm211, %v255, 0
  %340 = vmatpush.msra.mxu0 0.0
  %341 = vmatpush.msra.mxu0 0.0
  %342 = vmatpush.msra.mxu0 0.0
  %343 = vmatpush.msra.mxu0 0.0
  %344 = vmatpush.msra.mxu0 0.0
  %345 = vmatpush.msra.mxu0 0.0
  %346 = vmatpush.msra.mxu0 0.0
  %347 = vmatpush.msra.mxu0 0.0
  %348 = vmatpush.msra.mxu0 0.0
  %349 = vmatpush.msra.mxu0 0.0
  %350 = vmatpush.msra.mxu0 0.0
  %351 = vmatpush.msra.mxu0 0.0
  %352 = vmatpush.msra.mxu0 0.0
  %353 = vmatpush.msra.mxu0 0.0
  %354 = vmatpush.msra.mxu0 0.0
  %355 = vmatpush.msra.mxu0 %v335
  %356 = vmatmul.f32.gmra.mxu0 %v338
  %v357 = vpop.f32.mrf.mxu0
  %v358 = vadd.f32 0.0, %v357
  %359 = vdwg.mxu0
  %v360 = vld [vmem:[%s4] sm:$0xff]
  %v361 = vld [vmem:[%s4 + $0x8] sm:$0xff]
  %362 = vrot.lane.b32.xlu0 %v70, 112
  %v363 = vpop.permute.xlu0 %362
  %364 = vrot.lane.b32.xlu0 %v70, 80
  %v365 = vpop.permute.xlu0 %364
  %v366 = vsel %vm89, %v363, 0
  %v368 = vsel %vm89, %v365, 0
  %370 = vmatpush.xpose.msra.mxu0 0.0
  %371 = vmatpush.xpose.msra.mxu0 0.0
  %372 = vmatpush.xpose.msra.mxu0 0.0
  %373 = vmatpush.xpose.msra.mxu0 0.0
  %374 = vmatpush.xpose.msra.mxu0 0.0
  %375 = vmatpush.xpose.msra.mxu0 0.0
  %376 = vmatpush.xpose.msra.mxu0 0.0
  %377 = vmatpush.xpose.msra.mxu0 0.0
  %378 = vmatpush.xpose.msra.mxu0 0.0
  %379 = vmatpush.xpose.msra.mxu0 0.0
  %380 = vmatpush.xpose.msra.mxu0 0.0
  %381 = vmatpush.xpose.msra.mxu0 0.0
  %382 = vmatpush.xpose.msra.mxu0 0.0
  %383 = vmatpush.xpose.msra.mxu0 0.0
  %384 = vmatpush.xpose.msra.mxu0 0.0
  %385 = vmatpush.xpose.msra.mxu0 %v368
  %386 = vmatmul.f32.gmra.mxu0 %v366
  %v387 = vpop.f32.mrf.mxu0
  %v388 = vadd.f32 0.0, %v387
  %389 = vdwg.mxu0
  %390 = vrot.lane.b32.xlu0 %v73, 112
  %v391 = vpop.permute.xlu0 %390
  %392 = vrot.lane.b32.xlu0 %v73, 80
  %v393 = vpop.permute.xlu0 %392
  %v394 = vsel %vm89, %v391, 0
  %v396 = vsel %vm89, %v393, 0
  %398 = vmatpush.xpose.msra.mxu0 0.0
  %399 = vmatpush.xpose.msra.mxu0 0.0
  %400 = vmatpush.xpose.msra.mxu0 0.0
  %401 = vmatpush.xpose.msra.mxu0 0.0
  %402 = vmatpush.xpose.msra.mxu0 0.0
  %403 = vmatpush.xpose.msra.mxu0 0.0
  %404 = vmatpush.xpose.msra.mxu0 0.0
  %405 = vmatpush.xpose.msra.mxu0 0.0
  %406 = vmatpush.xpose.msra.mxu0 0.0
  %407 = vmatpush.xpose.msra.mxu0 0.0
  %408 = vmatpush.xpose.msra.mxu0 0.0
  %409 = vmatpush.xpose.msra.mxu0 0.0
  %410 = vmatpush.xpose.msra.mxu0 0.0
  %411 = vmatpush.xpose.msra.mxu0 0.0
  %412 = vmatpush.xpose.msra.mxu0 0.0
  %413 = vmatpush.xpose.msra.mxu0 %v396
  %414 = vmatmul.f32.gmra.mxu0 %v394
  %v415 = vpop.f32.mrf.mxu0
  %v416 = vadd.f32 0.0, %v415
  %417 = vdwg.mxu0
  %418 = vrot.lane.b32.xlu0 %v76, 112
  %v419 = vpop.permute.xlu0 %418
  %420 = vrot.lane.b32.xlu0 %v76, 80
  %v421 = vpop.permute.xlu0 %420
  %v422 = vsel %vm89, %v419, 0
  %v424 = vsel %vm89, %v421, 0
  %426 = vmatpush.xpose.msra.mxu0 0.0
  %427 = vmatpush.xpose.msra.mxu0 0.0
  %428 = vmatpush.xpose.msra.mxu0 0.0
  %429 = vmatpush.xpose.msra.mxu0 0.0
  %430 = vmatpush.xpose.msra.mxu0 0.0
  %431 = vmatpush.xpose.msra.mxu0 0.0
  %432 = vmatpush.xpose.msra.mxu0 0.0
  %433 = vmatpush.xpose.msra.mxu0 0.0
  %434 = vmatpush.xpose.msra.mxu0 0.0
  %435 = vmatpush.xpose.msra.mxu0 0.0
  %436 = vmatpush.xpose.msra.mxu0 0.0
  %437 = vmatpush.xpose.msra.mxu0 0.0
  %438 = vmatpush.xpose.msra.mxu0 0.0
  %439 = vmatpush.xpose.msra.mxu0 0.0
  %440 = vmatpush.xpose.msra.mxu0 0.0
  %441 = vmatpush.xpose.msra.mxu0 %v424
  %442 = vmatmul.f32.gmra.mxu0 %v422
  %v443 = vpop.f32.mrf.mxu0
  %v444 = vadd.f32 0.0, %v443
  %445 = vdwg.mxu0
  %446 = vrot.lane.b32.xlu0 %v79, 112
  %v447 = vpop.permute.xlu0 %446
  %448 = vrot.lane.b32.xlu0 %v79, 80
  %v449 = vpop.permute.xlu0 %448
  %v450 = vsel %vm89, %v447, 0
  %v452 = vsel %vm89, %v449, 0
  %454 = vmatpush.xpose.msra.mxu0 0.0
  %455 = vmatpush.xpose.msra.mxu0 0.0
  %456 = vmatpush.xpose.msra.mxu0 0.0
  %457 = vmatpush.xpose.msra.mxu0 0.0
  %458 = vmatpush.xpose.msra.mxu0 0.0
  %459 = vmatpush.xpose.msra.mxu0 0.0
  %460 = vmatpush.xpose.msra.mxu0 0.0
  %461 = vmatpush.xpose.msra.mxu0 0.0
  %462 = vmatpush.xpose.msra.mxu0 0.0
  %463 = vmatpush.xpose.msra.mxu0 0.0
  %464 = vmatpush.xpose.msra.mxu0 0.0
  %465 = vmatpush.xpose.msra.mxu0 0.0
  %466 = vmatpush.xpose.msra.mxu0 0.0
  %467 = vmatpush.xpose.msra.mxu0 0.0
  %468 = vmatpush.xpose.msra.mxu0 0.0
  %469 = vmatpush.xpose.msra.mxu0 %v452
  %470 = vmatmul.f32.gmra.mxu0 %v450
  %v471 = vpop.f32.mrf.mxu0
  %v472 = vadd.f32 0.0, %v471
  %473 = vdwg.mxu0
  %v474 = vmul.f32 %v388, 0.25
  %v475 = vmul.f32 %v416, 0.25
  %v476 = vmul.f32 %v444, 0.25
  %v477 = vmul.f32 %v472, 0.25
  %v478 = vadd.f32 %v474, %v199
  %v479 = vadd.f32 %v475, %v200
  %v480 = vadd.f32 %v476, %v201
  %v481 = vadd.f32 %v477, %v202
  %v482 = vsel %vm211, %v478, -inf
  %483 = vmax.xlane.f32.xlu0 %v482
  %v484 = vpop.xlane.xlu0 %483
  %v485 = vsel %vm211, %v479, -inf
  %486 = vmax.xlane.f32.xlu0 %v485
  %v487 = vpop.xlane.xlu0 %486
  %v488 = vsel %vm211, %v480, -inf
  %489 = vmax.xlane.f32.xlu0 %v488
  %v490 = vpop.xlane.xlu0 %489
  %v491 = vsel %vm211, %v481, -inf
  %492 = vmax.xlane.f32.xlu0 %v491
  %v493 = vpop.xlane.xlu0 %492
  %v494 = vsub.f32 %v478, %v484
  %v495 = vsub.f32 %v479, %v487
  %v496 = vsub.f32 %v480, %v490
  %v497 = vsub.f32 %v481, %v493
  %v498 = vmul.f32 %v494, 1.442695
  %v499 = vpow.pop %v498
  %v500 = vmul.f32 %v495, 1.442695
  %v501 = vpow.pop %v500
  %v502 = vmul.f32 %v496, 1.442695
  %v503 = vpow.pop %v502
  %v504 = vmul.f32 %v497, 1.442695
  %v505 = vpow.pop %v504
  %v506 = vsel %vm211, %v499, 0.0
  %507 = vadd.xlane.f32.xlu0 %v506
  %v508 = vpop.xlane.xlu0 %507
  %v509 = vsel %vm211, %v501, 0.0
  %510 = vadd.xlane.f32.xlu0 %v509
  %v511 = vpop.xlane.xlu0 %510
  %v512 = vsel %vm211, %v503, 0.0
  %513 = vadd.xlane.f32.xlu0 %v512
  %v514 = vpop.xlane.xlu0 %513
  %v515 = vsel %vm211, %v505, 0.0
  %516 = vadd.xlane.f32.xlu0 %v515
  %v517 = vpop.xlane.xlu0 %516
  %v518 = vrcp.pop %v508
  %v519 = vrcp.pop %v511
  %v520 = vrcp.pop %v514
  %v521 = vrcp.pop %v517
  %v522 = vmul.f32 %v499, %v518
  %v523 = vmul.f32 %v501, %v519
  %v524 = vmul.f32 %v503, %v520
  %v525 = vmul.f32 %v505, %v521
  %526 = vrot.lane.b32.xlu0 %v70, 48
  %v527 = vpop.permute.xlu0 %526
  %v530 = vsel %vm211, %v522, 0
  %532 = vmatpush.msra.mxu0 0.0
  %533 = vmatpush.msra.mxu0 0.0
  %534 = vmatpush.msra.mxu0 0.0
  %535 = vmatpush.msra.mxu0 0.0
  %536 = vmatpush.msra.mxu0 0.0
  %537 = vmatpush.msra.mxu0 0.0
  %538 = vmatpush.msra.mxu0 0.0
  %539 = vmatpush.msra.mxu0 0.0
  %540 = vmatpush.msra.mxu0 0.0
  %541 = vmatpush.msra.mxu0 0.0
  %542 = vmatpush.msra.mxu0 0.0
  %543 = vmatpush.msra.mxu0 0.0
  %544 = vmatpush.msra.mxu0 0.0
  %545 = vmatpush.msra.mxu0 0.0
  %546 = vmatpush.msra.mxu0 0.0
  %547 = vmatpush.msra.mxu0 %v527
  %548 = vmatmul.f32.gmra.mxu0 %v530
  %v549 = vpop.f32.mrf.mxu0
  %v550 = vadd.f32 0.0, %v549
  %551 = vdwg.mxu0
  %552 = vrot.lane.b32.xlu0 %v73, 48
  %v553 = vpop.permute.xlu0 %552
  %v556 = vsel %vm211, %v523, 0
  %558 = vmatpush.msra.mxu0 0.0
  %559 = vmatpush.msra.mxu0 0.0
  %560 = vmatpush.msra.mxu0 0.0
  %561 = vmatpush.msra.mxu0 0.0
  %562 = vmatpush.msra.mxu0 0.0
  %563 = vmatpush.msra.mxu0 0.0
  %564 = vmatpush.msra.mxu0 0.0
  %565 = vmatpush.msra.mxu0 0.0
  %566 = vmatpush.msra.mxu0 0.0
  %567 = vmatpush.msra.mxu0 0.0
  %568 = vmatpush.msra.mxu0 0.0
  %569 = vmatpush.msra.mxu0 0.0
  %570 = vmatpush.msra.mxu0 0.0
  %571 = vmatpush.msra.mxu0 0.0
  %572 = vmatpush.msra.mxu0 0.0
  %573 = vmatpush.msra.mxu0 %v553
  %574 = vmatmul.f32.gmra.mxu0 %v556
  %v575 = vpop.f32.mrf.mxu0
  %v576 = vadd.f32 0.0, %v575
  %577 = vdwg.mxu0
  %578 = vrot.lane.b32.xlu0 %v76, 48
  %v579 = vpop.permute.xlu0 %578
  %v582 = vsel %vm211, %v524, 0
  %584 = vmatpush.msra.mxu0 0.0
  %585 = vmatpush.msra.mxu0 0.0
  %586 = vmatpush.msra.mxu0 0.0
  %587 = vmatpush.msra.mxu0 0.0
  %588 = vmatpush.msra.mxu0 0.0
  %589 = vmatpush.msra.mxu0 0.0
  %590 = vmatpush.msra.mxu0 0.0
  %591 = vmatpush.msra.mxu0 0.0
  %592 = vmatpush.msra.mxu0 0.0
  %593 = vmatpush.msra.mxu0 0.0
  %594 = vmatpush.msra.mxu0 0.0
  %595 = vmatpush.msra.mxu0 0.0
  %596 = vmatpush.msra.mxu0 0.0
  %597 = vmatpush.msra.mxu0 0.0
  %598 = vmatpush.msra.mxu0 0.0
  %599 = vmatpush.msra.mxu0 %v579
  %600 = vmatmul.f32.gmra.mxu0 %v582
  %v601 = vpop.f32.mrf.mxu0
  %v602 = vadd.f32 0.0, %v601
  %603 = vdwg.mxu0
  %604 = vrot.lane.b32.xlu0 %v79, 48
  %v605 = vpop.permute.xlu0 %604
  %v608 = vsel %vm211, %v525, 0
  %610 = vmatpush.msra.mxu0 0.0
  %611 = vmatpush.msra.mxu0 0.0
  %612 = vmatpush.msra.mxu0 0.0
  %613 = vmatpush.msra.mxu0 0.0
  %614 = vmatpush.msra.mxu0 0.0
  %615 = vmatpush.msra.mxu0 0.0
  %616 = vmatpush.msra.mxu0 0.0
  %617 = vmatpush.msra.mxu0 0.0
  %618 = vmatpush.msra.mxu0 0.0
  %619 = vmatpush.msra.mxu0 0.0
  %620 = vmatpush.msra.mxu0 0.0
  %621 = vmatpush.msra.mxu0 0.0
  %622 = vmatpush.msra.mxu0 0.0
  %623 = vmatpush.msra.mxu0 0.0
  %624 = vmatpush.msra.mxu0 0.0
  %625 = vmatpush.msra.mxu0 %v605
  %626 = vmatmul.f32.gmra.mxu0 %v608
  %v627 = vpop.f32.mrf.mxu0
  %v628 = vadd.f32 0.0, %v627
  %629 = vdwg.mxu0
  %v630 = vld [vmem:[%s4 + $0x10] sm:$0xff]
  %v631 = vld [vmem:[%s4 + $0x18] sm:$0xff]
  %v633 = vsel %vm89, %v550, 0
  %v636 = vsel %vm89, %v576, 0
  %v639 = vsel %vm89, %v602, 0
  %v642 = vsel %vm89, %v628, 0
  %644 = vmatpush.msra.mxu0 0.0
  %645 = vmatpush.msra.mxu0 0.0
  %646 = vmatpush.msra.mxu0 0.0
  %647 = vmatpush.msra.mxu0 0.0
  %648 = vmatpush.msra.mxu0 0.0
  %649 = vmatpush.msra.mxu0 0.0
  %650 = vmatpush.msra.mxu0 0.0
  %651 = vmatpush.msra.mxu0 0.0
  %652 = vmatpush.msra.mxu0 0.0
  %653 = vmatpush.msra.mxu0 0.0
  %654 = vmatpush.msra.mxu0 0.0
  %655 = vmatpush.msra.mxu0 0.0
  %656 = vmatpush.msra.mxu0 0.0
  %657 = vmatpush.msra.mxu0 0.0
  %658 = vmatpush.msra.mxu0 %v631
  %659 = vmatpush.msra.mxu0 %v630
  %660 = vmatmul.f32.gmra.mxu0 %v633
  %v661 = vpop.f32.mrf.mxu0
  %v662 = vadd.f32 0.0, %v661
  %663 = vmatmul.f32.gmra.mxu0 %v636
  %v664 = vpop.f32.mrf.mxu0
  %v665 = vadd.f32 0.0, %v664
  %666 = vmatmul.f32.gmra.mxu0 %v639
  %v667 = vpop.f32.mrf.mxu0
  %v668 = vadd.f32 0.0, %v667
  %669 = vmatmul.f32.gmra.mxu0 %v642
  %v670 = vpop.f32.mrf.mxu0
  %v671 = vadd.f32 0.0, %v670
  %672 = vdwg.mxu0
  %v674 = vsel %vm89, %v280, 0
  %v677 = vsel %vm89, %v306, 0
  %v680 = vsel %vm89, %v332, 0
  %v683 = vsel %vm89, %v358, 0
  %685 = vmatpush.msra.mxu0 0.0
  %686 = vmatpush.msra.mxu0 0.0
  %687 = vmatpush.msra.mxu0 0.0
  %688 = vmatpush.msra.mxu0 0.0
  %689 = vmatpush.msra.mxu0 0.0
  %690 = vmatpush.msra.mxu0 0.0
  %691 = vmatpush.msra.mxu0 0.0
  %692 = vmatpush.msra.mxu0 0.0
  %693 = vmatpush.msra.mxu0 0.0
  %694 = vmatpush.msra.mxu0 0.0
  %695 = vmatpush.msra.mxu0 0.0
  %696 = vmatpush.msra.mxu0 0.0
  %697 = vmatpush.msra.mxu0 0.0
  %698 = vmatpush.msra.mxu0 0.0
  %699 = vmatpush.msra.mxu0 %v361
  %700 = vmatpush.msra.mxu0 %v360
  %701 = vmatmul.f32.gmra.mxu0 %v674
  %v702 = vpop.f32.mrf.mxu0
  %v703 = vadd.f32 %v662, %v702
  %704 = vmatmul.f32.gmra.mxu0 %v677
  %v705 = vpop.f32.mrf.mxu0
  %v706 = vadd.f32 %v665, %v705
  %707 = vmatmul.f32.gmra.mxu0 %v680
  %v708 = vpop.f32.mrf.mxu0
  %v709 = vadd.f32 %v668, %v708
  %710 = vmatmul.f32.gmra.mxu0 %v683
  %v711 = vpop.f32.mrf.mxu0
  %v712 = vadd.f32 %v671, %v711
  %713 = vdwg.mxu0
  %v714 = vld [vmem:[%s5] sm:$0x1]
  %v716 = vperm.slane %v714, 0
  %v718 = vadd.f32 %v703, %v716
  %v719 = vadd.f32 %v706, %v716
  %v720 = vadd.f32 %v709, %v716
  %v721 = vadd.f32 %v712, %v716
  %vm722 = vcmask 261120
  %723 = vst.msk [vmem:[%s6] sm:$0xff] %vm722, %v718
  %724 = vst.msk [vmem:[%s6 + $0x8] sm:$0xff] %vm722, %v719
  %725 = vst.msk [vmem:[%s6 + $0x10] sm:$0xff] %vm722, %v720
  %726 = vst.msk [vmem:[%s6 + $0x18] sm:$0xff] %vm722, %v721
  // Predicated region
  $region26: #{set_attention_pallas.2} parent=0 // pred_check
    _
  $region27: #{set_attention_pallas.2} parent=0 // pred_check_branch
    %728 = sbr.rel (0) target = $region29
  $region28: #{set_attention_pallas.2} parent=0 // pred_region
    _
  $region29: #{set_attention_pallas.2} parent=0 // pred_fallthru
    _
  // Predicated region
  $region30: #{set_attention_pallas.2} parent=0 // pred_check
    _
  $region31: #{set_attention_pallas.2} parent=0 // pred_check_branch
    %730 = sbr.rel (0) target = $region33
  $region32: #{set_attention_pallas.2} parent=0 // pred_region
    _
  $region33: #{set_attention_pallas.2} parent=0 // pred_fallthru
    _

</llo_original>
